<compile_context>
chip_gen: v7x
topology: tpu7x:2x2x1
jax: 0.10.0
libtpu: 0.0.40
codegen_flags: <defaults>
</compile_context>

<pallas_src>
import functools

import jax
import jax.numpy as jnp
from jax.experimental import pallas as pl
from jax.experimental.pallas import tpu as pltpu


# ---------------------------------------------------------------------------
# Fused kernel: layer-wavefront stacked LSTM + final Linear on the last step.
# Gate column order inside all weights/biases is the permuted [i, f, o, g].
# Ref layout:
#   inputs : x      (T*B, n_in)     bf16, time-major (row = t*B + b)
#            w_ih0  (n_in, 4H)      bf16
#            w_rec  (L*H, L*4H)     f32   fused recurrent block weight
#            b_rec  (1, L*4H)       f32   per-layer biases (b_ih + b_hh), concatenated
#            fc_w   (H, n_out)      f32
#            fc_b   (1, n_out)      f32
#   outputs: logits (B, n_out) f32,  state (L, B, 2H) f32  (h | c packed on lanes)
# ---------------------------------------------------------------------------
def _fused_lstm_fc_kernel(x_ref, w_ih0_ref, w_rec_ref, b_rec_ref,
                          fc_w_ref, fc_b_ref, logits_ref, state_ref,
                          *, n_layer, hidden, batch, seq_len):
    L, H, B, T = n_layer, hidden, batch, seq_len
    G = 4 * H

    # Hoisted layer-0 input projection over all timesteps (one bf16 MXU pass,
    # off the serial recurrence).  Bias is added later via b_rec.
    gx = jnp.dot(x_ref[...], w_ih0_ref[...],
                 preferred_element_type=jnp.float32)            # (T*B, 4H) f32

    w_rec = w_rec_ref[...]                                      # (L*H, L*4H) f32
    b_rec = b_rec_ref[...]                                      # (1, L*4H)   f32

    h = [jnp.zeros((B, H), jnp.float32) for _ in range(L)]
    c = [jnp.zeros((B, H), jnp.float32) for _ in range(L)]

    def cell(gates, c_prev):
        # permuted gate layout [i, f, o, g]: ONE sigmoid over 3H, ONE tanh over H
        sig = jax.nn.sigmoid(gates[:, 0:3 * H])
        i_g = sig[:, 0 * H:1 * H]
        f_g = sig[:, 1 * H:2 * H]
        o_g = sig[:, 2 * H:3 * H]
        g_g = jnp.tanh(gates[:, 3 * H:4 * H])
        c_new = f_g * c_prev + i_g * g_g
        h_new = o_g * jnp.tanh(c_new)
        return h_new, c_new

    # Layer wavefront: super-step s runs layer l at timestep t = s - l.
    for s in range(T + L - 1):
        if s == 0:
            rec = None                      # all states zero: skip the matmul
        else:
            lhs = jnp.concatenate(h, axis=1) if L > 1 else h[0]     # (B, L*H)
            rec = jnp.dot(lhs, w_rec,
                          preferred_element_type=jnp.float32) + b_rec  # (B, L*4H)

        new_h, new_c = list(h), list(c)
        for l in range(L):
            t = s - l
            if not (0 <= t < T):
                continue
            if rec is None:                 # s == 0: only layer 0, zero state
                gates = gx[t * B:(t + 1) * B, :] + b_rec[:, 0:G]
            else:
                gates = rec[:, l * G:(l + 1) * G]
                if l == 0:
                    gates = gates + gx[t * B:(t + 1) * B, :]
            new_h[l], new_c[l] = cell(gates, c[l])
        h, c = new_h, new_c

    # Final per-layer state written once, packed (h | c) on lanes.
    for l in range(L):
        state_ref[l, :, :] = jnp.concatenate([h[l], c[l]], axis=1)

    # Fused FC head on the last timestep of the top layer.
    logits_ref[...] = (jnp.dot(h[L - 1], fc_w_ref[...],
                               preferred_element_type=jnp.float32)
                       + fc_b_ref[...])


# ---------------------------------------------------------------------------
# Wrapper: X (B, T, n_in) batch_first  ->  (logits (B, n_out),
#                                            (h_n (L, B, H), c_n (L, B, H)))
# ---------------------------------------------------------------------------
@jax.jit
def rnn_classifier_forward(X, params):
    H = params["fc_w"].shape[0]
    n_out = params["fc_w"].shape[1]
    L = params["w_rec"].shape[0] // H
    B, T, n_in = X.shape

    # Time-major 2D layout (row = t*B + b) + bf16 cast, so the hoisted input
    # projection is one (T*B, n_in) @ (n_in, 4H) bf16 matmul with no in-kernel
    # transpose and half the x DMA.
    x_tm = jnp.transpose(X, (1, 0, 2)).reshape(T * B, n_in).astype(jnp.bfloat16)

    kernel = functools.partial(_fused_lstm_fc_kernel, n_layer=L,
                               hidden=H, batch=B, seq_len=T)
    vmem = pl.BlockSpec(memory_space=pltpu.MemorySpace.VMEM)

    logits, state = pl.pallas_call(
        kernel,
        out_shape=(jax.ShapeDtypeStruct((B, n_out), jnp.float32),
                   jax.ShapeDtypeStruct((L, B, 2 * H), jnp.float32)),
        in_specs=[vmem] * 6,
        out_specs=(vmem, vmem),
    )(x_tm, params["w_ih0"], params["w_rec"], params["b_rec"],
      params["fc_w"], params["fc_b"])

    h_n = state[:, :, :H]
    c_n = state[:, :, H:]
    return logits, (h_n, c_n)


# ---------------------------------------------------------------------------
# Deterministic parameter init mirroring torch.nn.LSTM / Linear shapes.
# Gate columns permuted [i,f,g,o] -> [i,f,o,g]; layer>=1 W_ih and all W_hh are
# packed into the fused recurrent block weight used by the wavefront.
# ---------------------------------------------------------------------------
def _permute_gates(w, axis=0):
    i, f, g, o = jnp.split(w, 4, axis=axis)
    return jnp.concatenate([i, f, o, g], axis=axis)


def init_params(key, n_in, n_out, cell_size, n_layer):
    H = cell_size
    L = n_layer
    bound = 1.0 / float(H) ** 0.5

    layers = []
    for layer in range(L):
        d_in = n_in if layer == 0 else H
        key, k1, k2, k3, k4 = jax.random.split(key, 5)
        w_ih = jax.random.uniform(k1, (4 * H, d_in), jnp.float32, -bound, bound)
        w_hh = jax.random.uniform(k2, (4 * H, H), jnp.float32, -bound, bound)
        b_ih = jax.random.uniform(k3, (4 * H,), jnp.float32, -bound, bound)
        b_hh = jax.random.uniform(k4, (4 * H,), jnp.float32, -bound, bound)
        layers.append((_permute_gates(w_ih), _permute_gates(w_hh),
                       _permute_gates(b_ih + b_hh)))

    # Layer-0 input weight: bf16 MXU operand for the hoisted projection.
    w_ih0 = layers[0][0].T.astype(jnp.bfloat16)                   # (n_in, 4H)

    # Fused recurrent block weight (f32: kernel is latency-bound, keep accuracy).
    w_rec = jnp.zeros((L * H, L * 4 * H), jnp.float32)
    b_rec = jnp.zeros((1, L * 4 * H), jnp.float32)
    for l in range(L):
        w_ih_l, w_hh_l, b_l = layers[l]
        w_rec = w_rec.at[l * H:(l + 1) * H, l * 4 * H:(l + 1) * 4 * H].set(w_hh_l.T)
        if l >= 1:
            w_rec = w_rec.at[(l - 1) * H:l * H, l * 4 * H:(l + 1) * 4 * H].set(w_ih_l.T)
        b_rec = b_rec.at[0, l * 4 * H:(l + 1) * 4 * H].set(b_l)

    key, k1, k2 = jax.random.split(key, 3)
    w_fc = jax.random.uniform(k1, (n_out, H), jnp.float32, -bound, bound)
    b_fc = jax.random.uniform(k2, (n_out,), jnp.float32, -bound, bound)

    return {
        "w_ih0": w_ih0,                        # (n_in, 4H)   bf16
        "w_rec": w_rec,                        # (L*H, L*4H)  f32
        "b_rec": b_rec,                        # (1, L*4H)    f32
        "fc_w": w_fc.T,                        # (H, n_out)   f32
        "fc_b": b_fc.reshape(1, n_out),        # (1, n_out)   f32
    }


if __name__ == "__main__":
    # small shapes consistent with the module
    B, T = 2, 8
    n_in, cell_size, n_layer, n_out = 16, 32, 2, 8

    key = jax.random.PRNGKey(0)
    key, kx = jax.random.split(key)
    X = jax.random.normal(kx, (B, T, n_in), jnp.float32)

    params = init_params(key, n_in, n_out, cell_size, n_layer)

    logits, (h_n, c_n) = rnn_classifier_forward(X, params)
    jax.block_until_ready((logits, h_n, c_n))

    assert logits.shape == (B, n_out)
    assert h_n.shape == (n_layer, B, cell_size)
    assert c_n.shape == (n_layer, B, cell_size)
    print("KERNEL_OK")
</pallas_src>

<mosaic_0001>
module attributes {stable_mosaic.version = 11 : i64} {
  func.func @_fused_lstm_fc_kernel(%arg0: memref<16x16xbf16, #tpu.memory_space<vmem>>, %arg1: memref<16x128xbf16, #tpu.memory_space<vmem>>, %arg2: memref<64x256xf32, #tpu.memory_space<vmem>>, %arg3: memref<1x256xf32, #tpu.memory_space<vmem>>, %arg4: memref<32x8xf32, #tpu.memory_space<vmem>>, %arg5: memref<1x8xf32, #tpu.memory_space<vmem>>, %arg6: memref<2x8xf32, #tpu.memory_space<vmem>>, %arg7: memref<2x2x64xf32, #tpu.memory_space<vmem>>) attributes {dimension_semantics = [], scalar_prefetch = 0 : i64, scratch_operands = 0 : i64, tpu.core_type = #tpu.core_type<tc>} {
    %c0 = arith.constant 0 : index
    %c0_0 = arith.constant 0 : index
    %0 = vector.load %arg0[%c0, %c0_0] : memref<16x16xbf16, #tpu.memory_space<vmem>>, vector<16x16xbf16>
    %c0_1 = arith.constant 0 : index
    %c0_2 = arith.constant 0 : index
    %1 = vector.load %arg1[%c0_1, %c0_2] : memref<16x128xbf16, #tpu.memory_space<vmem>>, vector<16x128xbf16>
    %cst = arith.constant dense<0.000000e+00> : vector<16x128xf32>
    %2 = tpu.matmul %0, %1, %cst {dimension_numbers = #tpu.dot_dimension_numbers<[1], [0], [0], [1], [0, 0, 1, 1], [], []>} : vector<16x16xbf16>, vector<16x128xbf16>, vector<16x128xf32> -> vector<16x128xf32>
    %c0_3 = arith.constant 0 : index
    %c0_4 = arith.constant 0 : index
    %3 = vector.load %arg2[%c0_3, %c0_4] : memref<64x256xf32, #tpu.memory_space<vmem>>, vector<64x256xf32>
    %c0_5 = arith.constant 0 : index
    %c0_6 = arith.constant 0 : index
    %4 = vector.load %arg3[%c0_5, %c0_6] : memref<1x256xf32, #tpu.memory_space<vmem>>, vector<1x256xf32>
    %cst_7 = arith.constant 0.000000e+00 : f32
    %5 = vector.broadcast %cst_7 : f32 to vector<2x32xf32>
    %cst_8 = arith.constant 0.000000e+00 : f32
    %6 = vector.broadcast %cst_8 : f32 to vector<2x32xf32>
    %cst_9 = arith.constant 0.000000e+00 : f32
    %7 = vector.broadcast %cst_9 : f32 to vector<2x32xf32>
    %8 = vector.extract_strided_slice %2 {offsets = [0, 0], sizes = [2, 128], strides = [1, 1]} : vector<16x128xf32> to vector<2x128xf32>
    %9 = vector.extract_strided_slice %4 {offsets = [0, 0], sizes = [1, 128], strides = [1, 1]} : vector<1x256xf32> to vector<1x128xf32>
    %10 = vector.broadcast %9 : vector<1x128xf32> to vector<2x128xf32>
    %11 = arith.addf %8, %10 : vector<2x128xf32>
    %12 = vector.extract_strided_slice %11 {offsets = [0, 0], sizes = [2, 96], strides = [1, 1]} : vector<2x128xf32> to vector<2x96xf32>
    %13 = arith.negf %12 : vector<2x96xf32>
    %14 = math.exp %13 : vector<2x96xf32>
    %cst_10 = arith.constant 1.000000e+00 : f32
    %15 = vector.broadcast %cst_10 : f32 to vector<2x96xf32>
    %16 = arith.addf %15, %14 : vector<2x96xf32>
    %17 = arith.divf %15, %16 : vector<2x96xf32>
    %18 = vector.extract_strided_slice %17 {offsets = [0, 0], sizes = [2, 32], strides = [1, 1]} : vector<2x96xf32> to vector<2x32xf32>
    %19 = vector.extract_strided_slice %17 {offsets = [0, 32], sizes = [2, 32], strides = [1, 1]} : vector<2x96xf32> to vector<2x32xf32>
    %20 = vector.extract_strided_slice %17 {offsets = [0, 64], sizes = [2, 32], strides = [1, 1]} : vector<2x96xf32> to vector<2x32xf32>
    %21 = vector.extract_strided_slice %11 {offsets = [0, 96], sizes = [2, 32], strides = [1, 1]} : vector<2x128xf32> to vector<2x32xf32>
    %22 = math.tanh %21 : vector<2x32xf32>
    %23 = arith.mulf %19, %6 : vector<2x32xf32>
    %24 = arith.mulf %18, %22 : vector<2x32xf32>
    %25 = arith.addf %23, %24 : vector<2x32xf32>
    %26 = math.tanh %25 : vector<2x32xf32>
    %27 = arith.mulf %20, %26 : vector<2x32xf32>
    %28 = tpu.concatenate %27, %5 in 1 : vector<2x32xf32>, vector<2x32xf32> -> vector<2x64xf32>
    %cst_11 = arith.constant dense<0.000000e+00> : vector<2x256xf32>
    %29 = tpu.matmul %28, %3, %cst_11 {dimension_numbers = #tpu.dot_dimension_numbers<[1], [0], [0], [1], [0, 0, 1, 1], [], []>} : vector<2x64xf32>, vector<64x256xf32>, vector<2x256xf32> -> vector<2x256xf32>
    %30 = vector.broadcast %4 : vector<1x256xf32> to vector<2x256xf32>
    %31 = arith.addf %29, %30 : vector<2x256xf32>
    %32 = vector.extract_strided_slice %31 {offsets = [0, 0], sizes = [2, 128], strides = [1, 1]} : vector<2x256xf32> to vector<2x128xf32>
    %33 = vector.extract_strided_slice %2 {offsets = [2, 0], sizes = [2, 128], strides = [1, 1]} : vector<16x128xf32> to vector<2x128xf32>
    %34 = arith.addf %32, %33 : vector<2x128xf32>
    %35 = vector.extract_strided_slice %34 {offsets = [0, 0], sizes = [2, 96], strides = [1, 1]} : vector<2x128xf32> to vector<2x96xf32>
    %36 = arith.negf %35 : vector<2x96xf32>
    %37 = math.exp %36 : vector<2x96xf32>
    %cst_12 = arith.constant 1.000000e+00 : f32
    %38 = vector.broadcast %cst_12 : f32 to vector<2x96xf32>
    %39 = arith.addf %38, %37 : vector<2x96xf32>
    %40 = arith.divf %38, %39 : vector<2x96xf32>
    %41 = vector.extract_strided_slice %40 {offsets = [0, 0], sizes = [2, 32], strides = [1, 1]} : vector<2x96xf32> to vector<2x32xf32>
    %42 = vector.extract_strided_slice %40 {offsets = [0, 32], sizes = [2, 32], strides = [1, 1]} : vector<2x96xf32> to vector<2x32xf32>
    %43 = vector.extract_strided_slice %40 {offsets = [0, 64], sizes = [2, 32], strides = [1, 1]} : vector<2x96xf32> to vector<2x32xf32>
    %44 = vector.extract_strided_slice %34 {offsets = [0, 96], sizes = [2, 32], strides = [1, 1]} : vector<2x128xf32> to vector<2x32xf32>
    %45 = math.tanh %44 : vector<2x32xf32>
    %46 = arith.mulf %42, %25 : vector<2x32xf32>
    %47 = arith.mulf %41, %45 : vector<2x32xf32>
    %48 = arith.addf %46, %47 : vector<2x32xf32>
    %49 = math.tanh %48 : vector<2x32xf32>
    %50 = arith.mulf %43, %49 : vector<2x32xf32>
    %51 = vector.extract_strided_slice %31 {offsets = [0, 128], sizes = [2, 128], strides = [1, 1]} : vector<2x256xf32> to vector<2x128xf32>
    %52 = vector.extract_strided_slice %51 {offsets = [0, 0], sizes = [2, 96], strides = [1, 1]} : vector<2x128xf32> to vector<2x96xf32>
    %53 = arith.negf %52 : vector<2x96xf32>
    %54 = math.exp %53 : vector<2x96xf32>
    %cst_13 = arith.constant 1.000000e+00 : f32
    %55 = vector.broadcast %cst_13 : f32 to vector<2x96xf32>
    %56 = arith.addf %55, %54 : vector<2x96xf32>
    %57 = arith.divf %55, %56 : vector<2x96xf32>
    %58 = vector.extract_strided_slice %57 {offsets = [0, 0], sizes = [2, 32], strides = [1, 1]} : vector<2x96xf32> to vector<2x32xf32>
    %59 = vector.extract_strided_slice %57 {offsets = [0, 32], sizes = [2, 32], strides = [1, 1]} : vector<2x96xf32> to vector<2x32xf32>
    %60 = vector.extract_strided_slice %57 {offsets = [0, 64], sizes = [2, 32], strides = [1, 1]} : vector<2x96xf32> to vector<2x32xf32>
    %61 = vector.extract_strided_slice %51 {offsets = [0, 96], sizes = [2, 32], strides = [1, 1]} : vector<2x128xf32> to vector<2x32xf32>
    %62 = math.tanh %61 : vector<2x32xf32>
    %63 = arith.mulf %59, %7 : vector<2x32xf32>
    %64 = arith.mulf %58, %62 : vector<2x32xf32>
    %65 = arith.addf %63, %64 : vector<2x32xf32>
    %66 = math.tanh %65 : vector<2x32xf32>
    %67 = arith.mulf %60, %66 : vector<2x32xf32>
    %68 = tpu.concatenate %50, %67 in 1 : vector<2x32xf32>, vector<2x32xf32> -> vector<2x64xf32>
    %cst_14 = arith.constant dense<0.000000e+00> : vector<2x256xf32>
    %69 = tpu.matmul %68, %3, %cst_14 {dimension_numbers = #tpu.dot_dimension_numbers<[1], [0], [0], [1], [0, 0, 1, 1], [], []>} : vector<2x64xf32>, vector<64x256xf32>, vector<2x256xf32> -> vector<2x256xf32>
    %70 = vector.broadcast %4 : vector<1x256xf32> to vector<2x256xf32>
    %71 = arith.addf %69, %70 : vector<2x256xf32>
    %72 = vector.extract_strided_slice %71 {offsets = [0, 0], sizes = [2, 128], strides = [1, 1]} : vector<2x256xf32> to vector<2x128xf32>
    %73 = vector.extract_strided_slice %2 {offsets = [4, 0], sizes = [2, 128], strides = [1, 1]} : vector<16x128xf32> to vector<2x128xf32>
    %74 = arith.addf %72, %73 : vector<2x128xf32>
    %75 = vector.extract_strided_slice %74 {offsets = [0, 0], sizes = [2, 96], strides = [1, 1]} : vector<2x128xf32> to vector<2x96xf32>
    %76 = arith.negf %75 : vector<2x96xf32>
    %77 = math.exp %76 : vector<2x96xf32>
    %cst_15 = arith.constant 1.000000e+00 : f32
    %78 = vector.broadcast %cst_15 : f32 to vector<2x96xf32>
    %79 = arith.addf %78, %77 : vector<2x96xf32>
    %80 = arith.divf %78, %79 : vector<2x96xf32>
    %81 = vector.extract_strided_slice %80 {offsets = [0, 0], sizes = [2, 32], strides = [1, 1]} : vector<2x96xf32> to vector<2x32xf32>
    %82 = vector.extract_strided_slice %80 {offsets = [0, 32], sizes = [2, 32], strides = [1, 1]} : vector<2x96xf32> to vector<2x32xf32>
    %83 = vector.extract_strided_slice %80 {offsets = [0, 64], sizes = [2, 32], strides = [1, 1]} : vector<2x96xf32> to vector<2x32xf32>
    %84 = vector.extract_strided_slice %74 {offsets = [0, 96], sizes = [2, 32], strides = [1, 1]} : vector<2x128xf32> to vector<2x32xf32>
    %85 = math.tanh %84 : vector<2x32xf32>
    %86 = arith.mulf %82, %48 : vector<2x32xf32>
    %87 = arith.mulf %81, %85 : vector<2x32xf32>
    %88 = arith.addf %86, %87 : vector<2x32xf32>
    %89 = math.tanh %88 : vector<2x32xf32>
    %90 = arith.mulf %83, %89 : vector<2x32xf32>
    %91 = vector.extract_strided_slice %71 {offsets = [0, 128], sizes = [2, 128], strides = [1, 1]} : vector<2x256xf32> to vector<2x128xf32>
    %92 = vector.extract_strided_slice %91 {offsets = [0, 0], sizes = [2, 96], strides = [1, 1]} : vector<2x128xf32> to vector<2x96xf32>
    %93 = arith.negf %92 : vector<2x96xf32>
    %94 = math.exp %93 : vector<2x96xf32>
    %cst_16 = arith.constant 1.000000e+00 : f32
    %95 = vector.broadcast %cst_16 : f32 to vector<2x96xf32>
    %96 = arith.addf %95, %94 : vector<2x96xf32>
    %97 = arith.divf %95, %96 : vector<2x96xf32>
    %98 = vector.extract_strided_slice %97 {offsets = [0, 0], sizes = [2, 32], strides = [1, 1]} : vector<2x96xf32> to vector<2x32xf32>
    %99 = vector.extract_strided_slice %97 {offsets = [0, 32], sizes = [2, 32], strides = [1, 1]} : vector<2x96xf32> to vector<2x32xf32>
    %100 = vector.extract_strided_slice %97 {offsets = [0, 64], sizes = [2, 32], strides = [1, 1]} : vector<2x96xf32> to vector<2x32xf32>
    %101 = vector.extract_strided_slice %91 {offsets = [0, 96], sizes = [2, 32], strides = [1, 1]} : vector<2x128xf32> to vector<2x32xf32>
    %102 = math.tanh %101 : vector<2x32xf32>
    %103 = arith.mulf %99, %65 : vector<2x32xf32>
    %104 = arith.mulf %98, %102 : vector<2x32xf32>
    %105 = arith.addf %103, %104 : vector<2x32xf32>
    %106 = math.tanh %105 : vector<2x32xf32>
    %107 = arith.mulf %100, %106 : vector<2x32xf32>
    %108 = tpu.concatenate %90, %107 in 1 : vector<2x32xf32>, vector<2x32xf32> -> vector<2x64xf32>
    %cst_17 = arith.constant dense<0.000000e+00> : vector<2x256xf32>
    %109 = tpu.matmul %108, %3, %cst_17 {dimension_numbers = #tpu.dot_dimension_numbers<[1], [0], [0], [1], [0, 0, 1, 1], [], []>} : vector<2x64xf32>, vector<64x256xf32>, vector<2x256xf32> -> vector<2x256xf32>
    %110 = vector.broadcast %4 : vector<1x256xf32> to vector<2x256xf32>
    %111 = arith.addf %109, %110 : vector<2x256xf32>
    %112 = vector.extract_strided_slice %111 {offsets = [0, 0], sizes = [2, 128], strides = [1, 1]} : vector<2x256xf32> to vector<2x128xf32>
    %113 = vector.extract_strided_slice %2 {offsets = [6, 0], sizes = [2, 128], strides = [1, 1]} : vector<16x128xf32> to vector<2x128xf32>
    %114 = arith.addf %112, %113 : vector<2x128xf32>
    %115 = vector.extract_strided_slice %114 {offsets = [0, 0], sizes = [2, 96], strides = [1, 1]} : vector<2x128xf32> to vector<2x96xf32>
    %116 = arith.negf %115 : vector<2x96xf32>
    %117 = math.exp %116 : vector<2x96xf32>
    %cst_18 = arith.constant 1.000000e+00 : f32
    %118 = vector.broadcast %cst_18 : f32 to vector<2x96xf32>
    %119 = arith.addf %118, %117 : vector<2x96xf32>
    %120 = arith.divf %118, %119 : vector<2x96xf32>
    %121 = vector.extract_strided_slice %120 {offsets = [0, 0], sizes = [2, 32], strides = [1, 1]} : vector<2x96xf32> to vector<2x32xf32>
    %122 = vector.extract_strided_slice %120 {offsets = [0, 32], sizes = [2, 32], strides = [1, 1]} : vector<2x96xf32> to vector<2x32xf32>
    %123 = vector.extract_strided_slice %120 {offsets = [0, 64], sizes = [2, 32], strides = [1, 1]} : vector<2x96xf32> to vector<2x32xf32>
    %124 = vector.extract_strided_slice %114 {offsets = [0, 96], sizes = [2, 32], strides = [1, 1]} : vector<2x128xf32> to vector<2x32xf32>
    %125 = math.tanh %124 : vector<2x32xf32>
    %126 = arith.mulf %122, %88 : vector<2x32xf32>
    %127 = arith.mulf %121, %125 : vector<2x32xf32>
    %128 = arith.addf %126, %127 : vector<2x32xf32>
    %129 = math.tanh %128 : vector<2x32xf32>
    %130 = arith.mulf %123, %129 : vector<2x32xf32>
    %131 = vector.extract_strided_slice %111 {offsets = [0, 128], sizes = [2, 128], strides = [1, 1]} : vector<2x256xf32> to vector<2x128xf32>
    %132 = vector.extract_strided_slice %131 {offsets = [0, 0], sizes = [2, 96], strides = [1, 1]} : vector<2x128xf32> to vector<2x96xf32>
    %133 = arith.negf %132 : vector<2x96xf32>
    %134 = math.exp %133 : vector<2x96xf32>
    %cst_19 = arith.constant 1.000000e+00 : f32
    %135 = vector.broadcast %cst_19 : f32 to vector<2x96xf32>
    %136 = arith.addf %135, %134 : vector<2x96xf32>
    %137 = arith.divf %135, %136 : vector<2x96xf32>
    %138 = vector.extract_strided_slice %137 {offsets = [0, 0], sizes = [2, 32], strides = [1, 1]} : vector<2x96xf32> to vector<2x32xf32>
    %139 = vector.extract_strided_slice %137 {offsets = [0, 32], sizes = [2, 32], strides = [1, 1]} : vector<2x96xf32> to vector<2x32xf32>
    %140 = vector.extract_strided_slice %137 {offsets = [0, 64], sizes = [2, 32], strides = [1, 1]} : vector<2x96xf32> to vector<2x32xf32>
    %141 = vector.extract_strided_slice %131 {offsets = [0, 96], sizes = [2, 32], strides = [1, 1]} : vector<2x128xf32> to vector<2x32xf32>
    %142 = math.tanh %141 : vector<2x32xf32>
    %143 = arith.mulf %139, %105 : vector<2x32xf32>
    %144 = arith.mulf %138, %142 : vector<2x32xf32>
    %145 = arith.addf %143, %144 : vector<2x32xf32>
    %146 = math.tanh %145 : vector<2x32xf32>
    %147 = arith.mulf %140, %146 : vector<2x32xf32>
    %148 = tpu.concatenate %130, %147 in 1 : vector<2x32xf32>, vector<2x32xf32> -> vector<2x64xf32>
    %cst_20 = arith.constant dense<0.000000e+00> : vector<2x256xf32>
    %149 = tpu.matmul %148, %3, %cst_20 {dimension_numbers = #tpu.dot_dimension_numbers<[1], [0], [0], [1], [0, 0, 1, 1], [], []>} : vector<2x64xf32>, vector<64x256xf32>, vector<2x256xf32> -> vector<2x256xf32>
    %150 = vector.broadcast %4 : vector<1x256xf32> to vector<2x256xf32>
    %151 = arith.addf %149, %150 : vector<2x256xf32>
    %152 = vector.extract_strided_slice %151 {offsets = [0, 0], sizes = [2, 128], strides = [1, 1]} : vector<2x256xf32> to vector<2x128xf32>
    %153 = vector.extract_strided_slice %2 {offsets = [8, 0], sizes = [2, 128], strides = [1, 1]} : vector<16x128xf32> to vector<2x128xf32>
    %154 = arith.addf %152, %153 : vector<2x128xf32>
    %155 = vector.extract_strided_slice %154 {offsets = [0, 0], sizes = [2, 96], strides = [1, 1]} : vector<2x128xf32> to vector<2x96xf32>
    %156 = arith.negf %155 : vector<2x96xf32>
    %157 = math.exp %156 : vector<2x96xf32>
    %cst_21 = arith.constant 1.000000e+00 : f32
    %158 = vector.broadcast %cst_21 : f32 to vector<2x96xf32>
    %159 = arith.addf %158, %157 : vector<2x96xf32>
    %160 = arith.divf %158, %159 : vector<2x96xf32>
    %161 = vector.extract_strided_slice %160 {offsets = [0, 0], sizes = [2, 32], strides = [1, 1]} : vector<2x96xf32> to vector<2x32xf32>
    %162 = vector.extract_strided_slice %160 {offsets = [0, 32], sizes = [2, 32], strides = [1, 1]} : vector<2x96xf32> to vector<2x32xf32>
    %163 = vector.extract_strided_slice %160 {offsets = [0, 64], sizes = [2, 32], strides = [1, 1]} : vector<2x96xf32> to vector<2x32xf32>
    %164 = vector.extract_strided_slice %154 {offsets = [0, 96], sizes = [2, 32], strides = [1, 1]} : vector<2x128xf32> to vector<2x32xf32>
    %165 = math.tanh %164 : vector<2x32xf32>
    %166 = arith.mulf %162, %128 : vector<2x32xf32>
    %167 = arith.mulf %161, %165 : vector<2x32xf32>
    %168 = arith.addf %166, %167 : vector<2x32xf32>
    %169 = math.tanh %168 : vector<2x32xf32>
    %170 = arith.mulf %163, %169 : vector<2x32xf32>
    %171 = vector.extract_strided_slice %151 {offsets = [0, 128], sizes = [2, 128], strides = [1, 1]} : vector<2x256xf32> to vector<2x128xf32>
    %172 = vector.extract_strided_slice %171 {offsets = [0, 0], sizes = [2, 96], strides = [1, 1]} : vector<2x128xf32> to vector<2x96xf32>
    %173 = arith.negf %172 : vector<2x96xf32>
    %174 = math.exp %173 : vector<2x96xf32>
    %cst_22 = arith.constant 1.000000e+00 : f32
    %175 = vector.broadcast %cst_22 : f32 to vector<2x96xf32>
    %176 = arith.addf %175, %174 : vector<2x96xf32>
    %177 = arith.divf %175, %176 : vector<2x96xf32>
    %178 = vector.extract_strided_slice %177 {offsets = [0, 0], sizes = [2, 32], strides = [1, 1]} : vector<2x96xf32> to vector<2x32xf32>
    %179 = vector.extract_strided_slice %177 {offsets = [0, 32], sizes = [2, 32], strides = [1, 1]} : vector<2x96xf32> to vector<2x32xf32>
    %180 = vector.extract_strided_slice %177 {offsets = [0, 64], sizes = [2, 32], strides = [1, 1]} : vector<2x96xf32> to vector<2x32xf32>
    %181 = vector.extract_strided_slice %171 {offsets = [0, 96], sizes = [2, 32], strides = [1, 1]} : vector<2x128xf32> to vector<2x32xf32>
    %182 = math.tanh %181 : vector<2x32xf32>
    %183 = arith.mulf %179, %145 : vector<2x32xf32>
    %184 = arith.mulf %178, %182 : vector<2x32xf32>
    %185 = arith.addf %183, %184 : vector<2x32xf32>
    %186 = math.tanh %185 : vector<2x32xf32>
    %187 = arith.mulf %180, %186 : vector<2x32xf32>
    %188 = tpu.concatenate %170, %187 in 1 : vector<2x32xf32>, vector<2x32xf32> -> vector<2x64xf32>
    %cst_23 = arith.constant dense<0.000000e+00> : vector<2x256xf32>
    %189 = tpu.matmul %188, %3, %cst_23 {dimension_numbers = #tpu.dot_dimension_numbers<[1], [0], [0], [1], [0, 0, 1, 1], [], []>} : vector<2x64xf32>, vector<64x256xf32>, vector<2x256xf32> -> vector<2x256xf32>
    %190 = vector.broadcast %4 : vector<1x256xf32> to vector<2x256xf32>
    %191 = arith.addf %189, %190 : vector<2x256xf32>
    %192 = vector.extract_strided_slice %191 {offsets = [0, 0], sizes = [2, 128], strides = [1, 1]} : vector<2x256xf32> to vector<2x128xf32>
    %193 = vector.extract_strided_slice %2 {offsets = [10, 0], sizes = [2, 128], strides = [1, 1]} : vector<16x128xf32> to vector<2x128xf32>
    %194 = arith.addf %192, %193 : vector<2x128xf32>
    %195 = vector.extract_strided_slice %194 {offsets = [0, 0], sizes = [2, 96], strides = [1, 1]} : vector<2x128xf32> to vector<2x96xf32>
    %196 = arith.negf %195 : vector<2x96xf32>
    %197 = math.exp %196 : vector<2x96xf32>
    %cst_24 = arith.constant 1.000000e+00 : f32
    %198 = vector.broadcast %cst_24 : f32 to vector<2x96xf32>
    %199 = arith.addf %198, %197 : vector<2x96xf32>
    %200 = arith.divf %198, %199 : vector<2x96xf32>
    %201 = vector.extract_strided_slice %200 {offsets = [0, 0], sizes = [2, 32], strides = [1, 1]} : vector<2x96xf32> to vector<2x32xf32>
    %202 = vector.extract_strided_slice %200 {offsets = [0, 32], sizes = [2, 32], strides = [1, 1]} : vector<2x96xf32> to vector<2x32xf32>
    %203 = vector.extract_strided_slice %200 {offsets = [0, 64], sizes = [2, 32], strides = [1, 1]} : vector<2x96xf32> to vector<2x32xf32>
    %204 = vector.extract_strided_slice %194 {offsets = [0, 96], sizes = [2, 32], strides = [1, 1]} : vector<2x128xf32> to vector<2x32xf32>
    %205 = math.tanh %204 : vector<2x32xf32>
    %206 = arith.mulf %202, %168 : vector<2x32xf32>
    %207 = arith.mulf %201, %205 : vector<2x32xf32>
    %208 = arith.addf %206, %207 : vector<2x32xf32>
    %209 = math.tanh %208 : vector<2x32xf32>
    %210 = arith.mulf %203, %209 : vector<2x32xf32>
    %211 = vector.extract_strided_slice %191 {offsets = [0, 128], sizes = [2, 128], strides = [1, 1]} : vector<2x256xf32> to vector<2x128xf32>
    %212 = vector.extract_strided_slice %211 {offsets = [0, 0], sizes = [2, 96], strides = [1, 1]} : vector<2x128xf32> to vector<2x96xf32>
    %213 = arith.negf %212 : vector<2x96xf32>
    %214 = math.exp %213 : vector<2x96xf32>
    %cst_25 = arith.constant 1.000000e+00 : f32
    %215 = vector.broadcast %cst_25 : f32 to vector<2x96xf32>
    %216 = arith.addf %215, %214 : vector<2x96xf32>
    %217 = arith.divf %215, %216 : vector<2x96xf32>
    %218 = vector.extract_strided_slice %217 {offsets = [0, 0], sizes = [2, 32], strides = [1, 1]} : vector<2x96xf32> to vector<2x32xf32>
    %219 = vector.extract_strided_slice %217 {offsets = [0, 32], sizes = [2, 32], strides = [1, 1]} : vector<2x96xf32> to vector<2x32xf32>
    %220 = vector.extract_strided_slice %217 {offsets = [0, 64], sizes = [2, 32], strides = [1, 1]} : vector<2x96xf32> to vector<2x32xf32>
    %221 = vector.extract_strided_slice %211 {offsets = [0, 96], sizes = [2, 32], strides = [1, 1]} : vector<2x128xf32> to vector<2x32xf32>
    %222 = math.tanh %221 : vector<2x32xf32>
    %223 = arith.mulf %219, %185 : vector<2x32xf32>
    %224 = arith.mulf %218, %222 : vector<2x32xf32>
    %225 = arith.addf %223, %224 : vector<2x32xf32>
    %226 = math.tanh %225 : vector<2x32xf32>
    %227 = arith.mulf %220, %226 : vector<2x32xf32>
    %228 = tpu.concatenate %210, %227 in 1 : vector<2x32xf32>, vector<2x32xf32> -> vector<2x64xf32>
    %cst_26 = arith.constant dense<0.000000e+00> : vector<2x256xf32>
    %229 = tpu.matmul %228, %3, %cst_26 {dimension_numbers = #tpu.dot_dimension_numbers<[1], [0], [0], [1], [0, 0, 1, 1], [], []>} : vector<2x64xf32>, vector<64x256xf32>, vector<2x256xf32> -> vector<2x256xf32>
    %230 = vector.broadcast %4 : vector<1x256xf32> to vector<2x256xf32>
    %231 = arith.addf %229, %230 : vector<2x256xf32>
    %232 = vector.extract_strided_slice %231 {offsets = [0, 0], sizes = [2, 128], strides = [1, 1]} : vector<2x256xf32> to vector<2x128xf32>
    %233 = vector.extract_strided_slice %2 {offsets = [12, 0], sizes = [2, 128], strides = [1, 1]} : vector<16x128xf32> to vector<2x128xf32>
    %234 = arith.addf %232, %233 : vector<2x128xf32>
    %235 = vector.extract_strided_slice %234 {offsets = [0, 0], sizes = [2, 96], strides = [1, 1]} : vector<2x128xf32> to vector<2x96xf32>
    %236 = arith.negf %235 : vector<2x96xf32>
    %237 = math.exp %236 : vector<2x96xf32>
    %cst_27 = arith.constant 1.000000e+00 : f32
    %238 = vector.broadcast %cst_27 : f32 to vector<2x96xf32>
    %239 = arith.addf %238, %237 : vector<2x96xf32>
    %240 = arith.divf %238, %239 : vector<2x96xf32>
    %241 = vector.extract_strided_slice %240 {offsets = [0, 0], sizes = [2, 32], strides = [1, 1]} : vector<2x96xf32> to vector<2x32xf32>
    %242 = vector.extract_strided_slice %240 {offsets = [0, 32], sizes = [2, 32], strides = [1, 1]} : vector<2x96xf32> to vector<2x32xf32>
    %243 = vector.extract_strided_slice %240 {offsets = [0, 64], sizes = [2, 32], strides = [1, 1]} : vector<2x96xf32> to vector<2x32xf32>
    %244 = vector.extract_strided_slice %234 {offsets = [0, 96], sizes = [2, 32], strides = [1, 1]} : vector<2x128xf32> to vector<2x32xf32>
    %245 = math.tanh %244 : vector<2x32xf32>
    %246 = arith.mulf %242, %208 : vector<2x32xf32>
    %247 = arith.mulf %241, %245 : vector<2x32xf32>
    %248 = arith.addf %246, %247 : vector<2x32xf32>
    %249 = math.tanh %248 : vector<2x32xf32>
    %250 = arith.mulf %243, %249 : vector<2x32xf32>
    %251 = vector.extract_strided_slice %231 {offsets = [0, 128], sizes = [2, 128], strides = [1, 1]} : vector<2x256xf32> to vector<2x128xf32>
    %252 = vector.extract_strided_slice %251 {offsets = [0, 0], sizes = [2, 96], strides = [1, 1]} : vector<2x128xf32> to vector<2x96xf32>
    %253 = arith.negf %252 : vector<2x96xf32>
    %254 = math.exp %253 : vector<2x96xf32>
    %cst_28 = arith.constant 1.000000e+00 : f32
    %255 = vector.broadcast %cst_28 : f32 to vector<2x96xf32>
    %256 = arith.addf %255, %254 : vector<2x96xf32>
    %257 = arith.divf %255, %256 : vector<2x96xf32>
    %258 = vector.extract_strided_slice %257 {offsets = [0, 0], sizes = [2, 32], strides = [1, 1]} : vector<2x96xf32> to vector<2x32xf32>
    %259 = vector.extract_strided_slice %257 {offsets = [0, 32], sizes = [2, 32], strides = [1, 1]} : vector<2x96xf32> to vector<2x32xf32>
    %260 = vector.extract_strided_slice %257 {offsets = [0, 64], sizes = [2, 32], strides = [1, 1]} : vector<2x96xf32> to vector<2x32xf32>
    %261 = vector.extract_strided_slice %251 {offsets = [0, 96], sizes = [2, 32], strides = [1, 1]} : vector<2x128xf32> to vector<2x32xf32>
    %262 = math.tanh %261 : vector<2x32xf32>
    %263 = arith.mulf %259, %225 : vector<2x32xf32>
    %264 = arith.mulf %258, %262 : vector<2x32xf32>
    %265 = arith.addf %263, %264 : vector<2x32xf32>
    %266 = math.tanh %265 : vector<2x32xf32>
    %267 = arith.mulf %260, %266 : vector<2x32xf32>
    %268 = tpu.concatenate %250, %267 in 1 : vector<2x32xf32>, vector<2x32xf32> -> vector<2x64xf32>
    %cst_29 = arith.constant dense<0.000000e+00> : vector<2x256xf32>
    %269 = tpu.matmul %268, %3, %cst_29 {dimension_numbers = #tpu.dot_dimension_numbers<[1], [0], [0], [1], [0, 0, 1, 1], [], []>} : vector<2x64xf32>, vector<64x256xf32>, vector<2x256xf32> -> vector<2x256xf32>
    %270 = vector.broadcast %4 : vector<1x256xf32> to vector<2x256xf32>
    %271 = arith.addf %269, %270 : vector<2x256xf32>
    %272 = vector.extract_strided_slice %271 {offsets = [0, 0], sizes = [2, 128], strides = [1, 1]} : vector<2x256xf32> to vector<2x128xf32>
    %273 = vector.extract_strided_slice %2 {offsets = [14, 0], sizes = [2, 128], strides = [1, 1]} : vector<16x128xf32> to vector<2x128xf32>
    %274 = arith.addf %272, %273 : vector<2x128xf32>
    %275 = vector.extract_strided_slice %274 {offsets = [0, 0], sizes = [2, 96], strides = [1, 1]} : vector<2x128xf32> to vector<2x96xf32>
    %276 = arith.negf %275 : vector<2x96xf32>
    %277 = math.exp %276 : vector<2x96xf32>
    %cst_30 = arith.constant 1.000000e+00 : f32
    %278 = vector.broadcast %cst_30 : f32 to vector<2x96xf32>
    %279 = arith.addf %278, %277 : vector<2x96xf32>
    %280 = arith.divf %278, %279 : vector<2x96xf32>
    %281 = vector.extract_strided_slice %280 {offsets = [0, 0], sizes = [2, 32], strides = [1, 1]} : vector<2x96xf32> to vector<2x32xf32>
    %282 = vector.extract_strided_slice %280 {offsets = [0, 32], sizes = [2, 32], strides = [1, 1]} : vector<2x96xf32> to vector<2x32xf32>
    %283 = vector.extract_strided_slice %280 {offsets = [0, 64], sizes = [2, 32], strides = [1, 1]} : vector<2x96xf32> to vector<2x32xf32>
    %284 = vector.extract_strided_slice %274 {offsets = [0, 96], sizes = [2, 32], strides = [1, 1]} : vector<2x128xf32> to vector<2x32xf32>
    %285 = math.tanh %284 : vector<2x32xf32>
    %286 = arith.mulf %282, %248 : vector<2x32xf32>
    %287 = arith.mulf %281, %285 : vector<2x32xf32>
    %288 = arith.addf %286, %287 : vector<2x32xf32>
    %289 = math.tanh %288 : vector<2x32xf32>
    %290 = arith.mulf %283, %289 : vector<2x32xf32>
    %291 = vector.extract_strided_slice %271 {offsets = [0, 128], sizes = [2, 128], strides = [1, 1]} : vector<2x256xf32> to vector<2x128xf32>
    %292 = vector.extract_strided_slice %291 {offsets = [0, 0], sizes = [2, 96], strides = [1, 1]} : vector<2x128xf32> to vector<2x96xf32>
    %293 = arith.negf %292 : vector<2x96xf32>
    %294 = math.exp %293 : vector<2x96xf32>
    %cst_31 = arith.constant 1.000000e+00 : f32
    %295 = vector.broadcast %cst_31 : f32 to vector<2x96xf32>
    %296 = arith.addf %295, %294 : vector<2x96xf32>
    %297 = arith.divf %295, %296 : vector<2x96xf32>
    %298 = vector.extract_strided_slice %297 {offsets = [0, 0], sizes = [2, 32], strides = [1, 1]} : vector<2x96xf32> to vector<2x32xf32>
    %299 = vector.extract_strided_slice %297 {offsets = [0, 32], sizes = [2, 32], strides = [1, 1]} : vector<2x96xf32> to vector<2x32xf32>
    %300 = vector.extract_strided_slice %297 {offsets = [0, 64], sizes = [2, 32], strides = [1, 1]} : vector<2x96xf32> to vector<2x32xf32>
    %301 = vector.extract_strided_slice %291 {offsets = [0, 96], sizes = [2, 32], strides = [1, 1]} : vector<2x128xf32> to vector<2x32xf32>
    %302 = math.tanh %301 : vector<2x32xf32>
    %303 = arith.mulf %299, %265 : vector<2x32xf32>
    %304 = arith.mulf %298, %302 : vector<2x32xf32>
    %305 = arith.addf %303, %304 : vector<2x32xf32>
    %306 = math.tanh %305 : vector<2x32xf32>
    %307 = arith.mulf %300, %306 : vector<2x32xf32>
    %308 = tpu.concatenate %290, %307 in 1 : vector<2x32xf32>, vector<2x32xf32> -> vector<2x64xf32>
    %cst_32 = arith.constant dense<0.000000e+00> : vector<2x256xf32>
    %309 = tpu.matmul %308, %3, %cst_32 {dimension_numbers = #tpu.dot_dimension_numbers<[1], [0], [0], [1], [0, 0, 1, 1], [], []>} : vector<2x64xf32>, vector<64x256xf32>, vector<2x256xf32> -> vector<2x256xf32>
    %310 = vector.broadcast %4 : vector<1x256xf32> to vector<2x256xf32>
    %311 = arith.addf %309, %310 : vector<2x256xf32>
    %312 = vector.extract_strided_slice %311 {offsets = [0, 128], sizes = [2, 128], strides = [1, 1]} : vector<2x256xf32> to vector<2x128xf32>
    %313 = vector.extract_strided_slice %312 {offsets = [0, 0], sizes = [2, 96], strides = [1, 1]} : vector<2x128xf32> to vector<2x96xf32>
    %314 = arith.negf %313 : vector<2x96xf32>
    %315 = math.exp %314 : vector<2x96xf32>
    %cst_33 = arith.constant 1.000000e+00 : f32
    %316 = vector.broadcast %cst_33 : f32 to vector<2x96xf32>
    %317 = arith.addf %316, %315 : vector<2x96xf32>
    %318 = arith.divf %316, %317 : vector<2x96xf32>
    %319 = vector.extract_strided_slice %318 {offsets = [0, 0], sizes = [2, 32], strides = [1, 1]} : vector<2x96xf32> to vector<2x32xf32>
    %320 = vector.extract_strided_slice %318 {offsets = [0, 32], sizes = [2, 32], strides = [1, 1]} : vector<2x96xf32> to vector<2x32xf32>
    %321 = vector.extract_strided_slice %318 {offsets = [0, 64], sizes = [2, 32], strides = [1, 1]} : vector<2x96xf32> to vector<2x32xf32>
    %322 = vector.extract_strided_slice %312 {offsets = [0, 96], sizes = [2, 32], strides = [1, 1]} : vector<2x128xf32> to vector<2x32xf32>
    %323 = math.tanh %322 : vector<2x32xf32>
    %324 = arith.mulf %320, %305 : vector<2x32xf32>
    %325 = arith.mulf %319, %323 : vector<2x32xf32>
    %326 = arith.addf %324, %325 : vector<2x32xf32>
    %327 = math.tanh %326 : vector<2x32xf32>
    %328 = arith.mulf %321, %327 : vector<2x32xf32>
    %329 = tpu.concatenate %290, %288 in 1 : vector<2x32xf32>, vector<2x32xf32> -> vector<2x64xf32>
    %c0_34 = arith.constant 0 : index
    %c0_35 = arith.constant 0 : index
    %c0_36 = arith.constant 0 : index
    %330 = vector.load %arg7[%c0_34, %c0_35, %c0_36] : memref<2x2x64xf32, #tpu.memory_space<vmem>>, vector<1x2x64xf32>
    %331 = vector.shape_cast %330 : vector<1x2x64xf32> to vector<2x64xf32>
    %332 = vector.shape_cast %329 : vector<2x64xf32> to vector<1x2x64xf32>
    tpu.vector_store %arg7[%c0_34, %c0_35, %c0_36], %332 {strides = array<i32>} : memref<2x2x64xf32, #tpu.memory_space<vmem>>, vector<1x2x64xf32>,
    %333 = tpu.concatenate %328, %326 in 1 : vector<2x32xf32>, vector<2x32xf32> -> vector<2x64xf32>
    %c1 = arith.constant 1 : index
    %c0_37 = arith.constant 0 : index
    %c0_38 = arith.constant 0 : index
    %334 = vector.load %arg7[%c1, %c0_37, %c0_38] : memref<2x2x64xf32, #tpu.memory_space<vmem>>, vector<1x2x64xf32>
    %335 = vector.shape_cast %334 : vector<1x2x64xf32> to vector<2x64xf32>
    %336 = vector.shape_cast %333 : vector<2x64xf32> to vector<1x2x64xf32>
    tpu.vector_store %arg7[%c1, %c0_37, %c0_38], %336 {strides = array<i32>} : memref<2x2x64xf32, #tpu.memory_space<vmem>>, vector<1x2x64xf32>,
    %c0_39 = arith.constant 0 : index
    %c0_40 = arith.constant 0 : index
    %337 = vector.load %arg4[%c0_39, %c0_40] : memref<32x8xf32, #tpu.memory_space<vmem>>, vector<32x8xf32>
    %cst_41 = arith.constant dense<0.000000e+00> : vector<2x8xf32>
    %338 = tpu.matmul %328, %337, %cst_41 {dimension_numbers = #tpu.dot_dimension_numbers<[1], [0], [0], [1], [0, 0, 1, 1], [], []>} : vector<2x32xf32>, vector<32x8xf32>, vector<2x8xf32> -> vector<2x8xf32>
    %c0_42 = arith.constant 0 : index
    %c0_43 = arith.constant 0 : index
    %339 = vector.load %arg5[%c0_42, %c0_43] : memref<1x8xf32, #tpu.memory_space<vmem>>, vector<1x8xf32>
    %340 = vector.broadcast %339 : vector<1x8xf32> to vector<2x8xf32>
    %341 = arith.addf %338, %340 : vector<2x8xf32>
    %c0_44 = arith.constant 0 : index
    %c0_45 = arith.constant 0 : index
    %342 = vector.load %arg6[%c0_44, %c0_45] : memref<2x8xf32, #tpu.memory_space<vmem>>, vector<2x8xf32>
    tpu.vector_store %arg6[%c0_44, %c0_45], %341 {strides = array<i32>} : memref<2x8xf32, #tpu.memory_space<vmem>>, vector<2x8xf32>,
    return
  }
}

</mosaic_0001>

<llo_original>
// kernel: rnn_classifier_forward.1
$region0: #{rnn_classifier_forward.1}
  #allocation0 [shape = 'u32[]', space=smem, size = 0x4, offset = 0x4, fixed_abs, tag = 'smem constant byte address 0x4 - core index']
  #allocation1 [shape = 'u32[144,128]{1,0:T(1,128)}', space=vmem, size = 0x12000, scoped, tag = 'internal scratch']
  %s0 = inlined_call_operand.vmem [shape: bf16[16,16], index: 0, kind: input, shape index: {}]
  %s1 = inlined_call_operand.vmem [shape: bf16[16,128], index: 1, kind: input, shape index: {}]
  %s2 = inlined_call_operand.hbm [shape: f32[64,256], index: 2, kind: input, shape index: {}]
  %s3 = inlined_call_operand.vmem [shape: f32[1,256], index: 3, kind: input, shape index: {}]
  %s4 = inlined_call_operand.vmem [shape: f32[32,8], index: 4, kind: input, shape index: {}]
  %s5 = inlined_call_operand.vmem [shape: f32[1,8], index: 5, kind: input, shape index: {}]
  %s6 = inlined_call_operand.hbm [shape: f32[2,8], index: 6, kind: output, shape index: {0}]
  %s7 = inlined_call_operand.vmem [shape: f32[2,2,64], index: 7, kind: output, shape index: {1}]
  %8 = xla_tuple %s6, %s7
  %s9 = sld [smem:[#allocation0]]
  $region46: #{rnn_classifier_forward.1} parent=0
    _
  %s11 = ssub.s32 1, %s9
  %s12 = scalar_select 0, %s11, %s9
  $region1: #{rnn_classifier_forward.1} parent=0
    #allocation2 [shape = 'u8[65536]{0}', space=vmem, size = 0x10000, scoped, tag = 'input window, operand 2, single buffered']
    #allocation3 [shape = 's32[1]{0}', space=sflag, size = 0x4, scoped, tag = 'scoped memory for rnn_classifier_forward.1']
    #allocation4 [shape = 's32[1]{0}', space=sflag, size = 0x4, scoped, tag = 'scoped memory for rnn_classifier_forward.1']
    #allocation5 [shape = 'u8[1024]{0}', space=vmem, size = 0x400, scoped, tag = 'output window, operand 0, single buffered']
    %13 = vsyncpa [#allocation3], 0
    %14 = vsyncpa [#allocation4], 0
    // Predicated region
    $region2: #{rnn_classifier_forward.1} parent=1 // pred_check
      _
    $region3: #{rnn_classifier_forward.1} parent=1 // pred_check_branch
      %16 = sbr.rel (0) target = $region5
    $region4: #{rnn_classifier_forward.1} parent=1 // pred_region
      _
    $region5: #{rnn_classifier_forward.1} parent=1 // pred_fallthru
      _
    // Predicated region
    $region6: #{rnn_classifier_forward.1} parent=1 // pred_check
      _
    $region7: #{rnn_classifier_forward.1} parent=1 // pred_check_branch
      %18 = sbr.rel (0) target = $region9
    $region8: #{rnn_classifier_forward.1} parent=1 // pred_region
      _
    $region9: #{rnn_classifier_forward.1} parent=1 // pred_fallthru
      _
    // Predicated region
    $region10: #{rnn_classifier_forward.1} parent=1 // pred_check
      _
    $region11: #{rnn_classifier_forward.1} parent=1 // pred_check_branch
      %20 = sbr.rel (0) target = $region13
    $region12: #{rnn_classifier_forward.1} parent=1 // pred_region
      %s22 = ssub.s32 2048, 2048
      %23 = vsyncadd [#allocation3], %s22
      %s24 = sshll.u32 [#allocation2], 4
      %s25 = int_to_ptr.vmem [resolvable:$true] %s24
      %30 = dma.hbm_to_vmem [thread:$0]  %s2, 2048, %s25, [#allocation3], 256, 256, 16
    $region13: #{rnn_classifier_forward.1} parent=1 // pred_fallthru
      _
    // Predicated region
    $region14: #{rnn_classifier_forward.1} parent=1 // pred_check
      _
    $region15: #{rnn_classifier_forward.1} parent=1 // pred_check_branch
      %32 = sbr.rel (0) target = $region17
    $region16: #{rnn_classifier_forward.1} parent=1 // pred_region
      _
    $region17: #{rnn_classifier_forward.1} parent=1 // pred_fallthru
      _
    // Predicated region
    $region18: #{rnn_classifier_forward.1} parent=1 // pred_check
      _
    $region19: #{rnn_classifier_forward.1} parent=1 // pred_check_branch
      %34 = sbr.rel (0) target = $region21
    $region20: #{rnn_classifier_forward.1} parent=1 // pred_region
      _
    $region21: #{rnn_classifier_forward.1} parent=1 // pred_fallthru
      _
    // Predicated region
    $region22: #{rnn_classifier_forward.1} parent=1 // pred_check
      _
    $region23: #{rnn_classifier_forward.1} parent=1 // pred_check_branch
      %36 = sbr.rel (0) target = $region25
    $region24: #{rnn_classifier_forward.1} parent=1 // pred_region
      _
    $region25: #{rnn_classifier_forward.1} parent=1 // pred_fallthru
      _
    // Predicated region
    $region26: #{rnn_classifier_forward.1} parent=1 // pred_check
      _
    $region27: #{rnn_classifier_forward.1} parent=1 // pred_check_branch
      %38 = sbr.rel (0) target = $region29
    $region28: #{rnn_classifier_forward.1} parent=1 // pred_region
      %39 = dma.done [#allocation3], 2048
    $region29: #{rnn_classifier_forward.1} parent=1 // pred_fallthru
      _
    %v41 = vld [vmem:[%s0] sm:$0xf]
    %v42 = vld [vmem:[%s0 + $0x4] sm:$0xf]
    %v43 = vld [vmem:[%s1] sm:$0xf]
    %v44 = vld [vmem:[%s1 + $0x4] sm:$0xf]
    %v47 = vunpack.c.l.b16 %v41
    %v48 = vunpack.c.l.b16 %v42
    %v49 = vpack.c.b16 %v48, %v47
    %v52 = vunpack.c.l.b16 %v43
    %v53 = vunpack.c.l.b16 %v44
    %v54 = vpack.c.b16 %v53, %v52
    %vm56 = vcmask 130048
    %v58 = vsel %vm56, %v49, 0
    %60 = vmatprep.subr.bf16.mxu0 0
    %61 = vmatpush1.bf16.msra.mxu0 %v54
    %62 = vmatprep.subr.bf16.mxu0 0
    %63 = vmatpush1.bf16.msra.mxu0 0
    %64 = vmatprep.subr.bf16.mxu0 0
    %65 = vmatpush1.bf16.msra.mxu0 0
    %66 = vmatprep.subr.bf16.mxu0 0
    %67 = vmatpush1.bf16.msra.mxu0 0
    %68 = vmatprep.subr.bf16.mxu0 0
    %69 = vmatpush1.bf16.msra.mxu0 0
    %70 = vmatprep.subr.bf16.mxu0 0
    %71 = vmatpush1.bf16.msra.mxu0 0
    %72 = vmatprep.subr.bf16.mxu0 0
    %73 = vmatpush1.bf16.msra.mxu0 0
    %74 = vmatprep.subr.bf16.mxu0 0
    %75 = vmatpush1.bf16.msra.mxu0 0
    %76 = vmatprep.subr.bf16.mxu0 0
    %77 = vmatpush1.bf16.msra.mxu0 0
    %78 = vmatprep.subr.bf16.mxu0 0
    %79 = vmatpush1.bf16.msra.mxu0 0
    %80 = vmatprep.subr.bf16.mxu0 0
    %81 = vmatpush1.bf16.msra.mxu0 0
    %82 = vmatprep.subr.bf16.mxu0 0
    %83 = vmatpush1.bf16.msra.mxu0 0
    %84 = vmatprep.subr.bf16.mxu0 0
    %85 = vmatpush1.bf16.msra.mxu0 0
    %86 = vmatprep.subr.bf16.mxu0 0
    %87 = vmatpush1.bf16.msra.mxu0 0
    %88 = vmatprep.subr.bf16.mxu0 0
    %89 = vmatpush1.bf16.msra.mxu0 0
    %90 = vmatprep.subr.bf16.mxu0 0
    %91 = vmatpush1.bf16.msra.mxu0 0
    %92 = vmatprep.mubr.bf16.mxu0 0
    %93 = vmatmul.mubr.bf16.gmra.mrb[0].mxu0 %v58
    %v94 = vpop.f32.mrb[0].mxu0
    %v95 = vadd.f32 0.0, %v94
    %v96 = vpop.f32.mrb[0].mxu0
    %v97 = vpop.f32.mrb[0].mxu0
    %v98 = vadd.f32 0.0, %v97
    %v99 = vpop.f32.mrb[0].mxu0
    %100 = vdwg.mxu0
    %v101 = vld [vmem:[#allocation2] sm:$0xff]
    %v102 = vld [vmem:[#allocation2 + $0x8] sm:$0xff]
    %v103 = vld [vmem:[#allocation2 + $0x10] sm:$0xff]
    %v104 = vld [vmem:[#allocation2 + $0x18] sm:$0xff]
    %v105 = vld [vmem:[#allocation2 + $0x20] sm:$0xff]
    %v106 = vld [vmem:[#allocation2 + $0x28] sm:$0xff]
    %v107 = vld [vmem:[#allocation2 + $0x30] sm:$0xff]
    %v108 = vld [vmem:[#allocation2 + $0x38] sm:$0xff]
    %v109 = vld [vmem:[#allocation2 + $0x40] sm:$0xff]
    %v110 = vld [vmem:[#allocation2 + $0x48] sm:$0xff]
    %v111 = vld [vmem:[#allocation2 + $0x50] sm:$0xff]
    %v112 = vld [vmem:[#allocation2 + $0x58] sm:$0xff]
    %v113 = vld [vmem:[#allocation2 + $0x60] sm:$0xff]
    %v114 = vld [vmem:[#allocation2 + $0x68] sm:$0xff]
    %v115 = vld [vmem:[#allocation2 + $0x70] sm:$0xff]
    %v116 = vld [vmem:[#allocation2 + $0x78] sm:$0xff]
    %v117 = vld [vmem:[%s3] sm:$0x3]
    %v119 = vlaneseq
    %v120 = vshrl.u32 %v119, 7
    %v121 = vsub.s32 0, %v120
    %v122 = vrot.slane %v117, %v121
    %v124 = vadd.f32 %v95, %v122
    %v125 = vxor.u32 %v124, 2147483648
    %v126 = vmul.f32 %v125, 1.442695
    %v127 = vpow.pop %v126
    %v128 = vadd.f32 %v127, 1.0
    %v129 = vrcp.pop %v128
    %v130 = vmul.f32 1.0, %v129
    %v131 = vtanh.pop %v124
    %v132 = vmul.f32 %v130, 0.0
    %134 = vrot.lane.b32.xlu0 %v131, 32
    %v135 = vpop.permute.xlu0 %134
    %v137 = vmul.f32 %v130, %v135
    %139 = vrot.lane.b32.xlu0 %v137, 32
    %v140 = vpop.permute.xlu0 %139
    %v142 = vadd.f32 %v132, %v140
    %v143 = vtanh.pop %v142
    %145 = vrot.lane.b32.xlu0 %v143, 32
    %v146 = vpop.permute.xlu0 %145
    %v148 = vmul.f32 %v130, %v146
    %150 = vrot.lane.b32.xlu0 %v148, 64
    %v151 = vpop.permute.xlu0 %150
    %vm153 = vcmask 261120
    %v154 = vsel %vm153, %v151, 0.0
    %v155 = vlaneseq
    %v156 = vshrl.u32 %v155, 7
    %v157 = vsub.s32 1, %v156
    %v158 = vrot.slane %v117, %v157
    %vm160 = vcmask 523264
    %v162 = vsel %vm160, %v154, 0
    %164 = vmatprep.subr.mxu0 %v102
    %165 = vmatpush1.msra.mxu0 %v101
    %166 = vmatprep.subr.mxu0 %v104
    %167 = vmatpush1.msra.mxu0 %v103
    %168 = vmatprep.subr.mxu0 %v106
    %169 = vmatpush1.msra.mxu0 %v105
    %170 = vmatprep.subr.mxu0 %v108
    %171 = vmatpush1.msra.mxu0 %v107
    %172 = vmatprep.subr.mxu0 %v110
    %173 = vmatpush1.msra.mxu0 %v109
    %174 = vmatprep.subr.mxu0 %v112
    %175 = vmatpush1.msra.mxu0 %v111
    %176 = vmatprep.subr.mxu0 %v114
    %177 = vmatpush1.msra.mxu0 %v113
    %178 = vmatprep.subr.mxu0 %v116
    %179 = vmatpush1.msra.mxu0 %v115
    %180 = vmatprep.subr.mxu0 0.0
    %181 = vmatpush1.msra.mxu0 0.0
    %182 = vmatprep.subr.mxu0 0.0
    %183 = vmatpush1.msra.mxu0 0.0
    %184 = vmatprep.subr.mxu0 0.0
    %185 = vmatpush1.msra.mxu0 0.0
    %186 = vmatprep.subr.mxu0 0.0
    %187 = vmatpush1.msra.mxu0 0.0
    %188 = vmatprep.subr.mxu0 0.0
    %189 = vmatpush1.msra.mxu0 0.0
    %190 = vmatprep.subr.mxu0 0.0
    %191 = vmatpush1.msra.mxu0 0.0
    %192 = vmatprep.subr.mxu0 0.0
    %193 = vmatpush1.msra.mxu0 0.0
    %194 = vmatprep.subr.mxu0 0.0
    %195 = vmatpush1.msra.mxu0 0.0
    %196 = vmatprep.subr.mxu0 0.0
    %197 = vmatpush1.msra.mxu0 0.0
    %198 = vmatprep.subr.mxu0 0.0
    %199 = vmatpush1.msra.mxu0 0.0
    %200 = vmatprep.subr.mxu0 0.0
    %201 = vmatpush1.msra.mxu0 0.0
    %202 = vmatprep.subr.mxu0 0.0
    %203 = vmatpush1.msra.mxu0 0.0
    %204 = vmatprep.subr.mxu0 0.0
    %205 = vmatpush1.msra.mxu0 0.0
    %206 = vmatprep.subr.mxu0 0.0
    %207 = vmatpush1.msra.mxu0 0.0
    %208 = vmatprep.subr.mxu0 0.0
    %209 = vmatpush1.msra.mxu0 0.0
    %210 = vmatprep.subr.mxu0 0.0
    %211 = vmatpush1.msra.mxu0 0.0
    %212 = vmatprep.subr.mxu0 0.0
    %213 = vmatpush1.msra.mxu0 0.0
    %214 = vmatprep.subr.mxu0 0.0
    %215 = vmatpush1.msra.mxu0 0.0
    %216 = vmatprep.subr.mxu0 0.0
    %217 = vmatpush1.msra.mxu0 0.0
    %218 = vmatprep.subr.mxu0 0.0
    %219 = vmatpush1.msra.mxu0 0.0
    %220 = vmatprep.subr.mxu0 0.0
    %221 = vmatpush1.msra.mxu0 0.0
    %222 = vmatprep.subr.mxu0 0.0
    %223 = vmatpush1.msra.mxu0 0.0
    %224 = vmatprep.subr.mxu0 0.0
    %225 = vmatpush1.msra.mxu0 0.0
    %226 = vmatprep.subr.mxu0 0.0
    %227 = vmatpush1.msra.mxu0 0.0
    %228 = vmatprep.mubr.f32.mxu0 0.0
    %229 = vmatmul.mubr.f32.gmra.mrb[0].mxu0 %v162
    %v230 = vpop.f32.mrb[0].mxu0
    %v231 = vadd.f32 %v122, %v230
    %v232 = vpop.f32.mrb[0].mxu0
    %v233 = vadd.f32 %v158, %v232
    %234 = vdwg.mxu0
    %v236 = vrot.slane %v95, 2
    %v238 = vadd.f32 %v231, %v236
    %v239 = vxor.u32 %v238, 2147483648
    %v240 = vmul.f32 %v239, 1.442695
    %v241 = vpow.pop %v240
    %v242 = vadd.f32 %v241, 1.0
    %v243 = vrcp.pop %v242
    %v244 = vmul.f32 1.0, %v243
    %v245 = vtanh.pop %v238
    %v246 = vmul.f32 %v244, %v142
    %248 = vrot.lane.b32.xlu0 %v245, 32
    %v249 = vpop.permute.xlu0 %248
    %v251 = vmul.f32 %v244, %v249
    %253 = vrot.lane.b32.xlu0 %v251, 32
    %v254 = vpop.permute.xlu0 %253
    %v256 = vadd.f32 %v246, %v254
    %v257 = vtanh.pop %v256
    %259 = vrot.lane.b32.xlu0 %v257, 32
    %v260 = vpop.permute.xlu0 %259
    %v262 = vmul.f32 %v244, %v260
    %v263 = vxor.u32 %v233, 2147483648
    %v264 = vmul.f32 %v263, 1.442695
    %v265 = vpow.pop %v264
    %v266 = vadd.f32 %v265, 1.0
    %v267 = vrcp.pop %v266
    %v268 = vmul.f32 1.0, %v267
    %v269 = vtanh.pop %v233
    %v270 = vmul.f32 %v268, 0.0
    %272 = vrot.lane.b32.xlu0 %v269, 32
    %v273 = vpop.permute.xlu0 %272
    %v275 = vmul.f32 %v268, %v273
    %277 = vrot.lane.b32.xlu0 %v275, 32
    %v278 = vpop.permute.xlu0 %277
    %v280 = vadd.f32 %v270, %v278
    %v281 = vtanh.pop %v280
    %283 = vrot.lane.b32.xlu0 %v281, 32
    %v284 = vpop.permute.xlu0 %283
    %v286 = vmul.f32 %v268, %v284
    %288 = vrot.lane.b32.xlu0 %v262, 64
    %v289 = vpop.permute.xlu0 %288
    %292 = vrot.lane.b32.xlu0 %v286, 96
    %v293 = vpop.permute.xlu0 %292
    %v295 = vsel %vm153, %v289, %v293
    %v297 = vsel %vm160, %v295, 0
    %299 = vmatprep.subr.mxu0 %v102
    %300 = vmatpush1.msra.mxu0 %v101
    %301 = vmatprep.subr.mxu0 %v104
    %302 = vmatpush1.msra.mxu0 %v103
    %303 = vmatprep.subr.mxu0 %v106
    %304 = vmatpush1.msra.mxu0 %v105
    %305 = vmatprep.subr.mxu0 %v108
    %306 = vmatpush1.msra.mxu0 %v107
    %307 = vmatprep.subr.mxu0 %v110
    %308 = vmatpush1.msra.mxu0 %v109
    %309 = vmatprep.subr.mxu0 %v112
    %310 = vmatpush1.msra.mxu0 %v111
    %311 = vmatprep.subr.mxu0 %v114
    %312 = vmatpush1.msra.mxu0 %v113
    %313 = vmatprep.subr.mxu0 %v116
    %314 = vmatpush1.msra.mxu0 %v115
    %315 = vmatprep.subr.mxu0 0.0
    %316 = vmatpush1.msra.mxu0 0.0
    %317 = vmatprep.subr.mxu0 0.0
    %318 = vmatpush1.msra.mxu0 0.0
    %319 = vmatprep.subr.mxu0 0.0
    %320 = vmatpush1.msra.mxu0 0.0
    %321 = vmatprep.subr.mxu0 0.0
    %322 = vmatpush1.msra.mxu0 0.0
    %323 = vmatprep.subr.mxu0 0.0
    %324 = vmatpush1.msra.mxu0 0.0
    %325 = vmatprep.subr.mxu0 0.0
    %326 = vmatpush1.msra.mxu0 0.0
    %327 = vmatprep.subr.mxu0 0.0
    %328 = vmatpush1.msra.mxu0 0.0
    %329 = vmatprep.subr.mxu0 0.0
    %330 = vmatpush1.msra.mxu0 0.0
    %331 = vmatprep.subr.mxu0 0.0
    %332 = vmatpush1.msra.mxu0 0.0
    %333 = vmatprep.subr.mxu0 0.0
    %334 = vmatpush1.msra.mxu0 0.0
    %335 = vmatprep.subr.mxu0 0.0
    %336 = vmatpush1.msra.mxu0 0.0
    %337 = vmatprep.subr.mxu0 0.0
    %338 = vmatpush1.msra.mxu0 0.0
    %339 = vmatprep.subr.mxu0 0.0
    %340 = vmatpush1.msra.mxu0 0.0
    %341 = vmatprep.subr.mxu0 0.0
    %342 = vmatpush1.msra.mxu0 0.0
    %343 = vmatprep.subr.mxu0 0.0
    %344 = vmatpush1.msra.mxu0 0.0
    %345 = vmatprep.subr.mxu0 0.0
    %346 = vmatpush1.msra.mxu0 0.0
    %347 = vmatprep.subr.mxu0 0.0
    %348 = vmatpush1.msra.mxu0 0.0
    %349 = vmatprep.subr.mxu0 0.0
    %350 = vmatpush1.msra.mxu0 0.0
    %351 = vmatprep.subr.mxu0 0.0
    %352 = vmatpush1.msra.mxu0 0.0
    %353 = vmatprep.subr.mxu0 0.0
    %354 = vmatpush1.msra.mxu0 0.0
    %355 = vmatprep.subr.mxu0 0.0
    %356 = vmatpush1.msra.mxu0 0.0
    %357 = vmatprep.subr.mxu0 0.0
    %358 = vmatpush1.msra.mxu0 0.0
    %359 = vmatprep.subr.mxu0 0.0
    %360 = vmatpush1.msra.mxu0 0.0
    %361 = vmatprep.subr.mxu0 0.0
    %362 = vmatpush1.msra.mxu0 0.0
    %363 = vmatprep.mubr.f32.mxu0 0.0
    %364 = vmatmul.mubr.f32.gmra.mrb[0].mxu0 %v297
    %v365 = vpop.f32.mrb[0].mxu0
    %v366 = vadd.f32 %v122, %v365
    %v367 = vpop.f32.mrb[0].mxu0
    %v368 = vadd.f32 %v158, %v367
    %369 = vdwg.mxu0
    %v370 = vrot.slane %v95, 4
    %v372 = vadd.f32 %v366, %v370
    %v373 = vxor.u32 %v372, 2147483648
    %v374 = vmul.f32 %v373, 1.442695
    %v375 = vpow.pop %v374
    %v376 = vadd.f32 %v375, 1.0
    %v377 = vrcp.pop %v376
    %v378 = vmul.f32 1.0, %v377
    %v379 = vtanh.pop %v372
    %v380 = vmul.f32 %v378, %v256
    %382 = vrot.lane.b32.xlu0 %v379, 32
    %v383 = vpop.permute.xlu0 %382
    %v385 = vmul.f32 %v378, %v383
    %387 = vrot.lane.b32.xlu0 %v385, 32
    %v388 = vpop.permute.xlu0 %387
    %v390 = vadd.f32 %v380, %v388
    %v391 = vtanh.pop %v390
    %393 = vrot.lane.b32.xlu0 %v391, 32
    %v394 = vpop.permute.xlu0 %393
    %v396 = vmul.f32 %v378, %v394
    %v397 = vxor.u32 %v368, 2147483648
    %v398 = vmul.f32 %v397, 1.442695
    %v399 = vpow.pop %v398
    %v400 = vadd.f32 %v399, 1.0
    %v401 = vrcp.pop %v400
    %v402 = vmul.f32 1.0, %v401
    %v403 = vtanh.pop %v368
    %v404 = vmul.f32 %v402, %v280
    %406 = vrot.lane.b32.xlu0 %v403, 32
    %v407 = vpop.permute.xlu0 %406
    %v409 = vmul.f32 %v402, %v407
    %411 = vrot.lane.b32.xlu0 %v409, 32
    %v412 = vpop.permute.xlu0 %411
    %v414 = vadd.f32 %v404, %v412
    %v415 = vtanh.pop %v414
    %417 = vrot.lane.b32.xlu0 %v415, 32
    %v418 = vpop.permute.xlu0 %417
    %v420 = vmul.f32 %v402, %v418
    %422 = vrot.lane.b32.xlu0 %v396, 64
    %v423 = vpop.permute.xlu0 %422
    %426 = vrot.lane.b32.xlu0 %v420, 96
    %v427 = vpop.permute.xlu0 %426
    %v429 = vsel %vm153, %v423, %v427
    %v431 = vsel %vm160, %v429, 0
    %433 = vmatprep.subr.mxu0 %v102
    %434 = vmatpush1.msra.mxu0 %v101
    %435 = vmatprep.subr.mxu0 %v104
    %436 = vmatpush1.msra.mxu0 %v103
    %437 = vmatprep.subr.mxu0 %v106
    %438 = vmatpush1.msra.mxu0 %v105
    %439 = vmatprep.subr.mxu0 %v108
    %440 = vmatpush1.msra.mxu0 %v107
    %441 = vmatprep.subr.mxu0 %v110
    %442 = vmatpush1.msra.mxu0 %v109
    %443 = vmatprep.subr.mxu0 %v112
    %444 = vmatpush1.msra.mxu0 %v111
    %445 = vmatprep.subr.mxu0 %v114
    %446 = vmatpush1.msra.mxu0 %v113
    %447 = vmatprep.subr.mxu0 %v116
    %448 = vmatpush1.msra.mxu0 %v115
    %449 = vmatprep.subr.mxu0 0.0
    %450 = vmatpush1.msra.mxu0 0.0
    %451 = vmatprep.subr.mxu0 0.0
    %452 = vmatpush1.msra.mxu0 0.0
    %453 = vmatprep.subr.mxu0 0.0
    %454 = vmatpush1.msra.mxu0 0.0
    %455 = vmatprep.subr.mxu0 0.0
    %456 = vmatpush1.msra.mxu0 0.0
    %457 = vmatprep.subr.mxu0 0.0
    %458 = vmatpush1.msra.mxu0 0.0
    %459 = vmatprep.subr.mxu0 0.0
    %460 = vmatpush1.msra.mxu0 0.0
    %461 = vmatprep.subr.mxu0 0.0
    %462 = vmatpush1.msra.mxu0 0.0
    %463 = vmatprep.subr.mxu0 0.0
    %464 = vmatpush1.msra.mxu0 0.0
    %465 = vmatprep.subr.mxu0 0.0
    %466 = vmatpush1.msra.mxu0 0.0
    %467 = vmatprep.subr.mxu0 0.0
    %468 = vmatpush1.msra.mxu0 0.0
    %469 = vmatprep.subr.mxu0 0.0
    %470 = vmatpush1.msra.mxu0 0.0
    %471 = vmatprep.subr.mxu0 0.0
    %472 = vmatpush1.msra.mxu0 0.0
    %473 = vmatprep.subr.mxu0 0.0
    %474 = vmatpush1.msra.mxu0 0.0
    %475 = vmatprep.subr.mxu0 0.0
    %476 = vmatpush1.msra.mxu0 0.0
    %477 = vmatprep.subr.mxu0 0.0
    %478 = vmatpush1.msra.mxu0 0.0
    %479 = vmatprep.subr.mxu0 0.0
    %480 = vmatpush1.msra.mxu0 0.0
    %481 = vmatprep.subr.mxu0 0.0
    %482 = vmatpush1.msra.mxu0 0.0
    %483 = vmatprep.subr.mxu0 0.0
    %484 = vmatpush1.msra.mxu0 0.0
    %485 = vmatprep.subr.mxu0 0.0
    %486 = vmatpush1.msra.mxu0 0.0
    %487 = vmatprep.subr.mxu0 0.0
    %488 = vmatpush1.msra.mxu0 0.0
    %489 = vmatprep.subr.mxu0 0.0
    %490 = vmatpush1.msra.mxu0 0.0
    %491 = vmatprep.subr.mxu0 0.0
    %492 = vmatpush1.msra.mxu0 0.0
    %493 = vmatprep.subr.mxu0 0.0
    %494 = vmatpush1.msra.mxu0 0.0
    %495 = vmatprep.subr.mxu0 0.0
    %496 = vmatpush1.msra.mxu0 0.0
    %497 = vmatprep.mubr.f32.mxu0 0.0
    %498 = vmatmul.mubr.f32.gmra.mrb[0].mxu0 %v431
    %v499 = vpop.f32.mrb[0].mxu0
    %v500 = vadd.f32 %v122, %v499
    %v501 = vpop.f32.mrb[0].mxu0
    %v502 = vadd.f32 %v158, %v501
    %503 = vdwg.mxu0
    %v504 = vrot.slane %v95, 6
    %v506 = vadd.f32 %v500, %v504
    %v507 = vxor.u32 %v506, 2147483648
    %v508 = vmul.f32 %v507, 1.442695
    %v509 = vpow.pop %v508
    %v510 = vadd.f32 %v509, 1.0
    %v511 = vrcp.pop %v510
    %v512 = vmul.f32 1.0, %v511
    %v513 = vtanh.pop %v506
    %v514 = vmul.f32 %v512, %v390
    %516 = vrot.lane.b32.xlu0 %v513, 32
    %v517 = vpop.permute.xlu0 %516
    %v519 = vmul.f32 %v512, %v517
    %521 = vrot.lane.b32.xlu0 %v519, 32
    %v522 = vpop.permute.xlu0 %521
    %v524 = vadd.f32 %v514, %v522
    %v525 = vtanh.pop %v524
    %527 = vrot.lane.b32.xlu0 %v525, 32
    %v528 = vpop.permute.xlu0 %527
    %v530 = vmul.f32 %v512, %v528
    %v531 = vxor.u32 %v502, 2147483648
    %v532 = vmul.f32 %v531, 1.442695
    %v533 = vpow.pop %v532
    %v534 = vadd.f32 %v533, 1.0
    %v535 = vrcp.pop %v534
    %v536 = vmul.f32 1.0, %v535
    %v537 = vtanh.pop %v502
    %v538 = vmul.f32 %v536, %v414
    %540 = vrot.lane.b32.xlu0 %v537, 32
    %v541 = vpop.permute.xlu0 %540
    %v543 = vmul.f32 %v536, %v541
    %545 = vrot.lane.b32.xlu0 %v543, 32
    %v546 = vpop.permute.xlu0 %545
    %v548 = vadd.f32 %v538, %v546
    %v549 = vtanh.pop %v548
    %551 = vrot.lane.b32.xlu0 %v549, 32
    %v552 = vpop.permute.xlu0 %551
    %v554 = vmul.f32 %v536, %v552
    %556 = vrot.lane.b32.xlu0 %v530, 64
    %v557 = vpop.permute.xlu0 %556
    %560 = vrot.lane.b32.xlu0 %v554, 96
    %v561 = vpop.permute.xlu0 %560
    %v563 = vsel %vm153, %v557, %v561
    %v565 = vsel %vm160, %v563, 0
    %567 = vmatprep.subr.mxu0 %v102
    %568 = vmatpush1.msra.mxu0 %v101
    %569 = vmatprep.subr.mxu0 %v104
    %570 = vmatpush1.msra.mxu0 %v103
    %571 = vmatprep.subr.mxu0 %v106
    %572 = vmatpush1.msra.mxu0 %v105
    %573 = vmatprep.subr.mxu0 %v108
    %574 = vmatpush1.msra.mxu0 %v107
    %575 = vmatprep.subr.mxu0 %v110
    %576 = vmatpush1.msra.mxu0 %v109
    %577 = vmatprep.subr.mxu0 %v112
    %578 = vmatpush1.msra.mxu0 %v111
    %579 = vmatprep.subr.mxu0 %v114
    %580 = vmatpush1.msra.mxu0 %v113
    %581 = vmatprep.subr.mxu0 %v116
    %582 = vmatpush1.msra.mxu0 %v115
    %583 = vmatprep.subr.mxu0 0.0
    %584 = vmatpush1.msra.mxu0 0.0
    %585 = vmatprep.subr.mxu0 0.0
    %586 = vmatpush1.msra.mxu0 0.0
    %587 = vmatprep.subr.mxu0 0.0
    %588 = vmatpush1.msra.mxu0 0.0
    %589 = vmatprep.subr.mxu0 0.0
    %590 = vmatpush1.msra.mxu0 0.0
    %591 = vmatprep.subr.mxu0 0.0
    %592 = vmatpush1.msra.mxu0 0.0
    %593 = vmatprep.subr.mxu0 0.0
    %594 = vmatpush1.msra.mxu0 0.0
    %595 = vmatprep.subr.mxu0 0.0
    %596 = vmatpush1.msra.mxu0 0.0
    %597 = vmatprep.subr.mxu0 0.0
    %598 = vmatpush1.msra.mxu0 0.0
    %599 = vmatprep.subr.mxu0 0.0
    %600 = vmatpush1.msra.mxu0 0.0
    %601 = vmatprep.subr.mxu0 0.0
    %602 = vmatpush1.msra.mxu0 0.0
    %603 = vmatprep.subr.mxu0 0.0
    %604 = vmatpush1.msra.mxu0 0.0
    %605 = vmatprep.subr.mxu0 0.0
    %606 = vmatpush1.msra.mxu0 0.0
    %607 = vmatprep.subr.mxu0 0.0
    %608 = vmatpush1.msra.mxu0 0.0
    %609 = vmatprep.subr.mxu0 0.0
    %610 = vmatpush1.msra.mxu0 0.0
    %611 = vmatprep.subr.mxu0 0.0
    %612 = vmatpush1.msra.mxu0 0.0
    %613 = vmatprep.subr.mxu0 0.0
    %614 = vmatpush1.msra.mxu0 0.0
    %615 = vmatprep.subr.mxu0 0.0
    %616 = vmatpush1.msra.mxu0 0.0
    %617 = vmatprep.subr.mxu0 0.0
    %618 = vmatpush1.msra.mxu0 0.0
    %619 = vmatprep.subr.mxu0 0.0
    %620 = vmatpush1.msra.mxu0 0.0
    %621 = vmatprep.subr.mxu0 0.0
    %622 = vmatpush1.msra.mxu0 0.0
    %623 = vmatprep.subr.mxu0 0.0
    %624 = vmatpush1.msra.mxu0 0.0
    %625 = vmatprep.subr.mxu0 0.0
    %626 = vmatpush1.msra.mxu0 0.0
    %627 = vmatprep.subr.mxu0 0.0
    %628 = vmatpush1.msra.mxu0 0.0
    %629 = vmatprep.subr.mxu0 0.0
    %630 = vmatpush1.msra.mxu0 0.0
    %631 = vmatprep.mubr.f32.mxu0 0.0
    %632 = vmatmul.mubr.f32.gmra.mrb[0].mxu0 %v565
    %v633 = vpop.f32.mrb[0].mxu0
    %v634 = vadd.f32 %v122, %v633
    %v635 = vpop.f32.mrb[0].mxu0
    %v636 = vadd.f32 %v158, %v635
    %637 = vdwg.mxu0
    %v638 = vadd.f32 %v634, %v98
    %v639 = vxor.u32 %v638, 2147483648
    %v640 = vmul.f32 %v639, 1.442695
    %v641 = vpow.pop %v640
    %v642 = vadd.f32 %v641, 1.0
    %v643 = vrcp.pop %v642
    %v644 = vmul.f32 1.0, %v643
    %v645 = vtanh.pop %v638
    %v646 = vmul.f32 %v644, %v524
    %648 = vrot.lane.b32.xlu0 %v645, 32
    %v649 = vpop.permute.xlu0 %648
    %v651 = vmul.f32 %v644, %v649
    %653 = vrot.lane.b32.xlu0 %v651, 32
    %v654 = vpop.permute.xlu0 %653
    %v656 = vadd.f32 %v646, %v654
    %v657 = vtanh.pop %v656
    %659 = vrot.lane.b32.xlu0 %v657, 32
    %v660 = vpop.permute.xlu0 %659
    %v662 = vmul.f32 %v644, %v660
    %v663 = vxor.u32 %v636, 2147483648
    %v664 = vmul.f32 %v663, 1.442695
    %v665 = vpow.pop %v664
    %v666 = vadd.f32 %v665, 1.0
    %v667 = vrcp.pop %v666
    %v668 = vmul.f32 1.0, %v667
    %v669 = vtanh.pop %v636
    %v670 = vmul.f32 %v668, %v548
    %672 = vrot.lane.b32.xlu0 %v669, 32
    %v673 = vpop.permute.xlu0 %672
    %v675 = vmul.f32 %v668, %v673
    %677 = vrot.lane.b32.xlu0 %v675, 32
    %v678 = vpop.permute.xlu0 %677
    %v680 = vadd.f32 %v670, %v678
    %v681 = vtanh.pop %v680
    %683 = vrot.lane.b32.xlu0 %v681, 32
    %v684 = vpop.permute.xlu0 %683
    %v686 = vmul.f32 %v668, %v684
    %688 = vrot.lane.b32.xlu0 %v662, 64
    %v689 = vpop.permute.xlu0 %688
    %692 = vrot.lane.b32.xlu0 %v686, 96
    %v693 = vpop.permute.xlu0 %692
    %v695 = vsel %vm153, %v689, %v693
    %v697 = vsel %vm160, %v695, 0
    %699 = vmatprep.subr.mxu0 %v102
    %700 = vmatpush1.msra.mxu0 %v101
    %701 = vmatprep.subr.mxu0 %v104
    %702 = vmatpush1.msra.mxu0 %v103
    %703 = vmatprep.subr.mxu0 %v106
    %704 = vmatpush1.msra.mxu0 %v105
    %705 = vmatprep.subr.mxu0 %v108
    %706 = vmatpush1.msra.mxu0 %v107
    %707 = vmatprep.subr.mxu0 %v110
    %708 = vmatpush1.msra.mxu0 %v109
    %709 = vmatprep.subr.mxu0 %v112
    %710 = vmatpush1.msra.mxu0 %v111
    %711 = vmatprep.subr.mxu0 %v114
    %712 = vmatpush1.msra.mxu0 %v113
    %713 = vmatprep.subr.mxu0 %v116
    %714 = vmatpush1.msra.mxu0 %v115
    %715 = vmatprep.subr.mxu0 0.0
    %716 = vmatpush1.msra.mxu0 0.0
    %717 = vmatprep.subr.mxu0 0.0
    %718 = vmatpush1.msra.mxu0 0.0
    %719 = vmatprep.subr.mxu0 0.0
    %720 = vmatpush1.msra.mxu0 0.0
    %721 = vmatprep.subr.mxu0 0.0
    %722 = vmatpush1.msra.mxu0 0.0
    %723 = vmatprep.subr.mxu0 0.0
    %724 = vmatpush1.msra.mxu0 0.0
    %725 = vmatprep.subr.mxu0 0.0
    %726 = vmatpush1.msra.mxu0 0.0
    %727 = vmatprep.subr.mxu0 0.0
    %728 = vmatpush1.msra.mxu0 0.0
    %729 = vmatprep.subr.mxu0 0.0
    %730 = vmatpush1.msra.mxu0 0.0
    %731 = vmatprep.subr.mxu0 0.0
    %732 = vmatpush1.msra.mxu0 0.0
    %733 = vmatprep.subr.mxu0 0.0
    %734 = vmatpush1.msra.mxu0 0.0
    %735 = vmatprep.subr.mxu0 0.0
    %736 = vmatpush1.msra.mxu0 0.0
    %737 = vmatprep.subr.mxu0 0.0
    %738 = vmatpush1.msra.mxu0 0.0
    %739 = vmatprep.subr.mxu0 0.0
    %740 = vmatpush1.msra.mxu0 0.0
    %741 = vmatprep.subr.mxu0 0.0
    %742 = vmatpush1.msra.mxu0 0.0
    %743 = vmatprep.subr.mxu0 0.0
    %744 = vmatpush1.msra.mxu0 0.0
    %745 = vmatprep.subr.mxu0 0.0
    %746 = vmatpush1.msra.mxu0 0.0
    %747 = vmatprep.subr.mxu0 0.0
    %748 = vmatpush1.msra.mxu0 0.0
    %749 = vmatprep.subr.mxu0 0.0
    %750 = vmatpush1.msra.mxu0 0.0
    %751 = vmatprep.subr.mxu0 0.0
    %752 = vmatpush1.msra.mxu0 0.0
    %753 = vmatprep.subr.mxu0 0.0
    %754 = vmatpush1.msra.mxu0 0.0
    %755 = vmatprep.subr.mxu0 0.0
    %756 = vmatpush1.msra.mxu0 0.0
    %757 = vmatprep.subr.mxu0 0.0
    %758 = vmatpush1.msra.mxu0 0.0
    %759 = vmatprep.subr.mxu0 0.0
    %760 = vmatpush1.msra.mxu0 0.0
    %761 = vmatprep.subr.mxu0 0.0
    %762 = vmatpush1.msra.mxu0 0.0
    %763 = vmatprep.mubr.f32.mxu0 0.0
    %764 = vmatmul.mubr.f32.gmra.mrb[0].mxu0 %v697
    %v765 = vpop.f32.mrb[0].mxu0
    %v766 = vadd.f32 %v122, %v765
    %v767 = vpop.f32.mrb[0].mxu0
    %v768 = vadd.f32 %v158, %v767
    %769 = vdwg.mxu0
    %v771 = vrot.slane %v98, 2
    %v773 = vadd.f32 %v766, %v771
    %v774 = vxor.u32 %v773, 2147483648
    %v775 = vmul.f32 %v774, 1.442695
    %v776 = vpow.pop %v775
    %v777 = vadd.f32 %v776, 1.0
    %v778 = vrcp.pop %v777
    %v779 = vmul.f32 1.0, %v778
    %v780 = vtanh.pop %v773
    %v781 = vmul.f32 %v779, %v656
    %783 = vrot.lane.b32.xlu0 %v780, 32
    %v784 = vpop.permute.xlu0 %783
    %v786 = vmul.f32 %v779, %v784
    %788 = vrot.lane.b32.xlu0 %v786, 32
    %v789 = vpop.permute.xlu0 %788
    %v791 = vadd.f32 %v781, %v789
    %v792 = vtanh.pop %v791
    %794 = vrot.lane.b32.xlu0 %v792, 32
    %v795 = vpop.permute.xlu0 %794
    %v797 = vmul.f32 %v779, %v795
    %v798 = vxor.u32 %v768, 2147483648
    %v799 = vmul.f32 %v798, 1.442695
    %v800 = vpow.pop %v799
    %v801 = vadd.f32 %v800, 1.0
    %v802 = vrcp.pop %v801
    %v803 = vmul.f32 1.0, %v802
    %v804 = vtanh.pop %v768
    %v805 = vmul.f32 %v803, %v680
    %807 = vrot.lane.b32.xlu0 %v804, 32
    %v808 = vpop.permute.xlu0 %807
    %v810 = vmul.f32 %v803, %v808
    %812 = vrot.lane.b32.xlu0 %v810, 32
    %v813 = vpop.permute.xlu0 %812
    %v815 = vadd.f32 %v805, %v813
    %v816 = vtanh.pop %v815
    %818 = vrot.lane.b32.xlu0 %v816, 32
    %v819 = vpop.permute.xlu0 %818
    %v821 = vmul.f32 %v803, %v819
    %823 = vrot.lane.b32.xlu0 %v797, 64
    %v824 = vpop.permute.xlu0 %823
    %827 = vrot.lane.b32.xlu0 %v821, 96
    %v828 = vpop.permute.xlu0 %827
    %v830 = vsel %vm153, %v824, %v828
    %v832 = vsel %vm160, %v830, 0
    %834 = vmatprep.subr.mxu0 %v102
    %835 = vmatpush1.msra.mxu0 %v101
    %836 = vmatprep.subr.mxu0 %v104
    %837 = vmatpush1.msra.mxu0 %v103
    %838 = vmatprep.subr.mxu0 %v106
    %839 = vmatpush1.msra.mxu0 %v105
    %840 = vmatprep.subr.mxu0 %v108
    %841 = vmatpush1.msra.mxu0 %v107
    %842 = vmatprep.subr.mxu0 %v110
    %843 = vmatpush1.msra.mxu0 %v109
    %844 = vmatprep.subr.mxu0 %v112
    %845 = vmatpush1.msra.mxu0 %v111
    %846 = vmatprep.subr.mxu0 %v114
    %847 = vmatpush1.msra.mxu0 %v113
    %848 = vmatprep.subr.mxu0 %v116
    %849 = vmatpush1.msra.mxu0 %v115
    %850 = vmatprep.subr.mxu0 0.0
    %851 = vmatpush1.msra.mxu0 0.0
    %852 = vmatprep.subr.mxu0 0.0
    %853 = vmatpush1.msra.mxu0 0.0
    %854 = vmatprep.subr.mxu0 0.0
    %855 = vmatpush1.msra.mxu0 0.0
    %856 = vmatprep.subr.mxu0 0.0
    %857 = vmatpush1.msra.mxu0 0.0
    %858 = vmatprep.subr.mxu0 0.0
    %859 = vmatpush1.msra.mxu0 0.0
    %860 = vmatprep.subr.mxu0 0.0
    %861 = vmatpush1.msra.mxu0 0.0
    %862 = vmatprep.subr.mxu0 0.0
    %863 = vmatpush1.msra.mxu0 0.0
    %864 = vmatprep.subr.mxu0 0.0
    %865 = vmatpush1.msra.mxu0 0.0
    %866 = vmatprep.subr.mxu0 0.0
    %867 = vmatpush1.msra.mxu0 0.0
    %868 = vmatprep.subr.mxu0 0.0
    %869 = vmatpush1.msra.mxu0 0.0
    %870 = vmatprep.subr.mxu0 0.0
    %871 = vmatpush1.msra.mxu0 0.0
    %872 = vmatprep.subr.mxu0 0.0
    %873 = vmatpush1.msra.mxu0 0.0
    %874 = vmatprep.subr.mxu0 0.0
    %875 = vmatpush1.msra.mxu0 0.0
    %876 = vmatprep.subr.mxu0 0.0
    %877 = vmatpush1.msra.mxu0 0.0
    %878 = vmatprep.subr.mxu0 0.0
    %879 = vmatpush1.msra.mxu0 0.0
    %880 = vmatprep.subr.mxu0 0.0
    %881 = vmatpush1.msra.mxu0 0.0
    %882 = vmatprep.subr.mxu0 0.0
    %883 = vmatpush1.msra.mxu0 0.0
    %884 = vmatprep.subr.mxu0 0.0
    %885 = vmatpush1.msra.mxu0 0.0
    %886 = vmatprep.subr.mxu0 0.0
    %887 = vmatpush1.msra.mxu0 0.0
    %888 = vmatprep.subr.mxu0 0.0
    %889 = vmatpush1.msra.mxu0 0.0
    %890 = vmatprep.subr.mxu0 0.0
    %891 = vmatpush1.msra.mxu0 0.0
    %892 = vmatprep.subr.mxu0 0.0
    %893 = vmatpush1.msra.mxu0 0.0
    %894 = vmatprep.subr.mxu0 0.0
    %895 = vmatpush1.msra.mxu0 0.0
    %896 = vmatprep.subr.mxu0 0.0
    %897 = vmatpush1.msra.mxu0 0.0
    %898 = vmatprep.mubr.f32.mxu0 0.0
    %899 = vmatmul.mubr.f32.gmra.mrb[0].mxu0 %v832
    %v900 = vpop.f32.mrb[0].mxu0
    %v901 = vadd.f32 %v122, %v900
    %v902 = vpop.f32.mrb[0].mxu0
    %v903 = vadd.f32 %v158, %v902
    %904 = vdwg.mxu0
    %v905 = vrot.slane %v98, 4
    %v907 = vadd.f32 %v901, %v905
    %v908 = vxor.u32 %v907, 2147483648
    %v909 = vmul.f32 %v908, 1.442695
    %v910 = vpow.pop %v909
    %v911 = vadd.f32 %v910, 1.0
    %v912 = vrcp.pop %v911
    %v913 = vmul.f32 1.0, %v912
    %v914 = vtanh.pop %v907
    %v915 = vmul.f32 %v913, %v791
    %917 = vrot.lane.b32.xlu0 %v914, 32
    %v918 = vpop.permute.xlu0 %917
    %v920 = vmul.f32 %v913, %v918
    %922 = vrot.lane.b32.xlu0 %v920, 32
    %v923 = vpop.permute.xlu0 %922
    %v925 = vadd.f32 %v915, %v923
    %v926 = vtanh.pop %v925
    %928 = vrot.lane.b32.xlu0 %v926, 32
    %v929 = vpop.permute.xlu0 %928
    %v931 = vmul.f32 %v913, %v929
    %v932 = vxor.u32 %v903, 2147483648
    %v933 = vmul.f32 %v932, 1.442695
    %v934 = vpow.pop %v933
    %v935 = vadd.f32 %v934, 1.0
    %v936 = vrcp.pop %v935
    %v937 = vmul.f32 1.0, %v936
    %v938 = vtanh.pop %v903
    %v939 = vmul.f32 %v937, %v815
    %941 = vrot.lane.b32.xlu0 %v938, 32
    %v942 = vpop.permute.xlu0 %941
    %v944 = vmul.f32 %v937, %v942
    %946 = vrot.lane.b32.xlu0 %v944, 32
    %v947 = vpop.permute.xlu0 %946
    %v949 = vadd.f32 %v939, %v947
    %v950 = vtanh.pop %v949
    %952 = vrot.lane.b32.xlu0 %v950, 32
    %v953 = vpop.permute.xlu0 %952
    %v955 = vmul.f32 %v937, %v953
    %957 = vrot.lane.b32.xlu0 %v931, 64
    %v958 = vpop.permute.xlu0 %957
    %961 = vrot.lane.b32.xlu0 %v955, 96
    %v962 = vpop.permute.xlu0 %961
    %v964 = vsel %vm153, %v958, %v962
    %v966 = vsel %vm160, %v964, 0
    %968 = vmatprep.subr.mxu0 %v102
    %969 = vmatpush1.msra.mxu0 %v101
    %970 = vmatprep.subr.mxu0 %v104
    %971 = vmatpush1.msra.mxu0 %v103
    %972 = vmatprep.subr.mxu0 %v106
    %973 = vmatpush1.msra.mxu0 %v105
    %974 = vmatprep.subr.mxu0 %v108
    %975 = vmatpush1.msra.mxu0 %v107
    %976 = vmatprep.subr.mxu0 %v110
    %977 = vmatpush1.msra.mxu0 %v109
    %978 = vmatprep.subr.mxu0 %v112
    %979 = vmatpush1.msra.mxu0 %v111
    %980 = vmatprep.subr.mxu0 %v114
    %981 = vmatpush1.msra.mxu0 %v113
    %982 = vmatprep.subr.mxu0 %v116
    %983 = vmatpush1.msra.mxu0 %v115
    %984 = vmatprep.subr.mxu0 0.0
    %985 = vmatpush1.msra.mxu0 0.0
    %986 = vmatprep.subr.mxu0 0.0
    %987 = vmatpush1.msra.mxu0 0.0
    %988 = vmatprep.subr.mxu0 0.0
    %989 = vmatpush1.msra.mxu0 0.0
    %990 = vmatprep.subr.mxu0 0.0
    %991 = vmatpush1.msra.mxu0 0.0
    %992 = vmatprep.subr.mxu0 0.0
    %993 = vmatpush1.msra.mxu0 0.0
    %994 = vmatprep.subr.mxu0 0.0
    %995 = vmatpush1.msra.mxu0 0.0
    %996 = vmatprep.subr.mxu0 0.0
    %997 = vmatpush1.msra.mxu0 0.0
    %998 = vmatprep.subr.mxu0 0.0
    %999 = vmatpush1.msra.mxu0 0.0
    %1000 = vmatprep.subr.mxu0 0.0
    %1001 = vmatpush1.msra.mxu0 0.0
    %1002 = vmatprep.subr.mxu0 0.0
    %1003 = vmatpush1.msra.mxu0 0.0
    %1004 = vmatprep.subr.mxu0 0.0
    %1005 = vmatpush1.msra.mxu0 0.0
    %1006 = vmatprep.subr.mxu0 0.0
    %1007 = vmatpush1.msra.mxu0 0.0
    %1008 = vmatprep.subr.mxu0 0.0
    %1009 = vmatpush1.msra.mxu0 0.0
    %1010 = vmatprep.subr.mxu0 0.0
    %1011 = vmatpush1.msra.mxu0 0.0
    %1012 = vmatprep.subr.mxu0 0.0
    %1013 = vmatpush1.msra.mxu0 0.0
    %1014 = vmatprep.subr.mxu0 0.0
    %1015 = vmatpush1.msra.mxu0 0.0
    %1016 = vmatprep.subr.mxu0 0.0
    %1017 = vmatpush1.msra.mxu0 0.0
    %1018 = vmatprep.subr.mxu0 0.0
    %1019 = vmatpush1.msra.mxu0 0.0
    %1020 = vmatprep.subr.mxu0 0.0
    %1021 = vmatpush1.msra.mxu0 0.0
    %1022 = vmatprep.subr.mxu0 0.0
    %1023 = vmatpush1.msra.mxu0 0.0
    %1024 = vmatprep.subr.mxu0 0.0
    %1025 = vmatpush1.msra.mxu0 0.0
    %1026 = vmatprep.subr.mxu0 0.0
    %1027 = vmatpush1.msra.mxu0 0.0
    %1028 = vmatprep.subr.mxu0 0.0
    %1029 = vmatpush1.msra.mxu0 0.0
    %1030 = vmatprep.subr.mxu0 0.0
    %1031 = vmatpush1.msra.mxu0 0.0
    %1032 = vmatprep.mubr.f32.mxu0 0.0
    %1033 = vmatmul.mubr.f32.gmra.mrb[0].mxu0 %v966
    %v1034 = vpop.f32.mrb[0].mxu0
    %v1035 = vadd.f32 %v122, %v1034
    %v1036 = vpop.f32.mrb[0].mxu0
    %v1037 = vadd.f32 %v158, %v1036
    %1038 = vdwg.mxu0
    %v1039 = vrot.slane %v98, 6
    %v1041 = vadd.f32 %v1035, %v1039
    %v1042 = vxor.u32 %v1041, 2147483648
    %v1043 = vmul.f32 %v1042, 1.442695
    %v1044 = vpow.pop %v1043
    %v1045 = vadd.f32 %v1044, 1.0
    %v1046 = vrcp.pop %v1045
    %v1047 = vmul.f32 1.0, %v1046
    %v1048 = vtanh.pop %v1041
    %v1049 = vmul.f32 %v1047, %v925
    %1051 = vrot.lane.b32.xlu0 %v1048, 32
    %v1052 = vpop.permute.xlu0 %1051
    %v1054 = vmul.f32 %v1047, %v1052
    %1056 = vrot.lane.b32.xlu0 %v1054, 32
    %v1057 = vpop.permute.xlu0 %1056
    %v1059 = vadd.f32 %v1049, %v1057
    %v1060 = vtanh.pop %v1059
    %1062 = vrot.lane.b32.xlu0 %v1060, 32
    %v1063 = vpop.permute.xlu0 %1062
    %v1065 = vmul.f32 %v1047, %v1063
    %v1066 = vxor.u32 %v1037, 2147483648
    %v1067 = vmul.f32 %v1066, 1.442695
    %v1068 = vpow.pop %v1067
    %v1069 = vadd.f32 %v1068, 1.0
    %v1070 = vrcp.pop %v1069
    %v1071 = vmul.f32 1.0, %v1070
    %v1072 = vtanh.pop %v1037
    %v1073 = vmul.f32 %v1071, %v949
    %1075 = vrot.lane.b32.xlu0 %v1072, 32
    %v1076 = vpop.permute.xlu0 %1075
    %v1078 = vmul.f32 %v1071, %v1076
    %1080 = vrot.lane.b32.xlu0 %v1078, 32
    %v1081 = vpop.permute.xlu0 %1080
    %v1083 = vadd.f32 %v1073, %v1081
    %v1084 = vtanh.pop %v1083
    %1086 = vrot.lane.b32.xlu0 %v1084, 32
    %v1087 = vpop.permute.xlu0 %1086
    %v1089 = vmul.f32 %v1071, %v1087
    %1091 = vrot.lane.b32.xlu0 %v1065, 64
    %v1092 = vpop.permute.xlu0 %1091
    %1095 = vrot.lane.b32.xlu0 %v1089, 96
    %v1096 = vpop.permute.xlu0 %1095
    %v1098 = vsel %vm153, %v1092, %v1096
    %v1100 = vsel %vm160, %v1098, 0
    %1102 = vmatprep.subr.mxu0 %v102
    %1103 = vmatpush1.msra.mxu0 %v101
    %1104 = vmatprep.subr.mxu0 %v104
    %1105 = vmatpush1.msra.mxu0 %v103
    %1106 = vmatprep.subr.mxu0 %v106
    %1107 = vmatpush1.msra.mxu0 %v105
    %1108 = vmatprep.subr.mxu0 %v108
    %1109 = vmatpush1.msra.mxu0 %v107
    %1110 = vmatprep.subr.mxu0 %v110
    %1111 = vmatpush1.msra.mxu0 %v109
    %1112 = vmatprep.subr.mxu0 %v112
    %1113 = vmatpush1.msra.mxu0 %v111
    %1114 = vmatprep.subr.mxu0 %v114
    %1115 = vmatpush1.msra.mxu0 %v113
    %1116 = vmatprep.subr.mxu0 %v116
    %1117 = vmatpush1.msra.mxu0 %v115
    %1118 = vmatprep.subr.mxu0 0.0
    %1119 = vmatpush1.msra.mxu0 0.0
    %1120 = vmatprep.subr.mxu0 0.0
    %1121 = vmatpush1.msra.mxu0 0.0
    %1122 = vmatprep.subr.mxu0 0.0
    %1123 = vmatpush1.msra.mxu0 0.0
    %1124 = vmatprep.subr.mxu0 0.0
    %1125 = vmatpush1.msra.mxu0 0.0
    %1126 = vmatprep.subr.mxu0 0.0
    %1127 = vmatpush1.msra.mxu0 0.0
    %1128 = vmatprep.subr.mxu0 0.0
    %1129 = vmatpush1.msra.mxu0 0.0
    %1130 = vmatprep.subr.mxu0 0.0
    %1131 = vmatpush1.msra.mxu0 0.0
    %1132 = vmatprep.subr.mxu0 0.0
    %1133 = vmatpush1.msra.mxu0 0.0
    %1134 = vmatprep.subr.mxu0 0.0
    %1135 = vmatpush1.msra.mxu0 0.0
    %1136 = vmatprep.subr.mxu0 0.0
    %1137 = vmatpush1.msra.mxu0 0.0
    %1138 = vmatprep.subr.mxu0 0.0
    %1139 = vmatpush1.msra.mxu0 0.0
    %1140 = vmatprep.subr.mxu0 0.0
    %1141 = vmatpush1.msra.mxu0 0.0
    %1142 = vmatprep.subr.mxu0 0.0
    %1143 = vmatpush1.msra.mxu0 0.0
    %1144 = vmatprep.subr.mxu0 0.0
    %1145 = vmatpush1.msra.mxu0 0.0
    %1146 = vmatprep.subr.mxu0 0.0
    %1147 = vmatpush1.msra.mxu0 0.0
    %1148 = vmatprep.subr.mxu0 0.0
    %1149 = vmatpush1.msra.mxu0 0.0
    %1150 = vmatprep.subr.mxu0 0.0
    %1151 = vmatpush1.msra.mxu0 0.0
    %1152 = vmatprep.subr.mxu0 0.0
    %1153 = vmatpush1.msra.mxu0 0.0
    %1154 = vmatprep.subr.mxu0 0.0
    %1155 = vmatpush1.msra.mxu0 0.0
    %1156 = vmatprep.subr.mxu0 0.0
    %1157 = vmatpush1.msra.mxu0 0.0
    %1158 = vmatprep.subr.mxu0 0.0
    %1159 = vmatpush1.msra.mxu0 0.0
    %1160 = vmatprep.subr.mxu0 0.0
    %1161 = vmatpush1.msra.mxu0 0.0
    %1162 = vmatprep.subr.mxu0 0.0
    %1163 = vmatpush1.msra.mxu0 0.0
    %1164 = vmatprep.subr.mxu0 0.0
    %1165 = vmatpush1.msra.mxu0 0.0
    %1166 = vmatprep.mubr.f32.mxu0 0.0
    %1167 = vmatmul.mubr.f32.gmra.mrb[0].mxu0 %v1100
    %v1168 = vpop.f32.mrb[0].mxu0
    %v1169 = vpop.f32.mrb[0].mxu0
    %v1170 = vadd.f32 %v158, %v1169
    %1171 = vdwg.mxu0
    %v1172 = vxor.u32 %v1170, 2147483648
    %v1173 = vmul.f32 %v1172, 1.442695
    %v1174 = vpow.pop %v1173
    %v1175 = vadd.f32 %v1174, 1.0
    %v1176 = vrcp.pop %v1175
    %v1177 = vmul.f32 1.0, %v1176
    %v1178 = vtanh.pop %v1170
    %v1179 = vmul.f32 %v1177, %v1083
    %1181 = vrot.lane.b32.xlu0 %v1178, 32
    %v1182 = vpop.permute.xlu0 %1181
    %v1184 = vmul.f32 %v1177, %v1182
    %1186 = vrot.lane.b32.xlu0 %v1184, 32
    %v1187 = vpop.permute.xlu0 %1186
    %v1189 = vadd.f32 %v1179, %v1187
    %v1190 = vtanh.pop %v1189
    %1192 = vrot.lane.b32.xlu0 %v1190, 32
    %v1193 = vpop.permute.xlu0 %1192
    %v1195 = vmul.f32 %v1177, %v1193
    %v1196 = vsel %vm153, %v1092, %v1059
    %vm1197 = vcmask 517120
    %1198 = vst.msk [vmem:[%s7] sm:$0x3] %vm1197, %v1196
    %1200 = vrot.lane.b32.xlu0 %v1195, 64
    %v1201 = vpop.permute.xlu0 %1200
    %v1203 = vsel %vm153, %v1201, %v1189
    %s1204 = scalar_lea.vmem %s7, 2
    %1205 = vst.msk [vmem:[%s1204] sm:$0x3] %vm1197, %v1203
    %v1206 = vld [vmem:[%s4] sm:$0xff]
    %v1207 = vld [vmem:[%s4 + $0x8] sm:$0xff]
    %v1208 = vld [vmem:[%s4 + $0x10] sm:$0xff]
    %v1209 = vld [vmem:[%s4 + $0x18] sm:$0xff]
    %v1210 = vld [vmem:[%s5] sm:$0x1]
    %v1212 = vlaneseq
    %v1213 = vshrl.u32 %v1212, 7
    %v1214 = vsub.s32 0, %v1213
    %v1215 = vrot.slane %v1210, %v1214
    %v1217 = vsel %vm153, %v1201, 0
    %1219 = vmatprep.subr.mxu0 0.0
    %1220 = vmatpush1.msra.mxu0 %v1206
    %1221 = vmatprep.subr.mxu0 0.0
    %1222 = vmatpush1.msra.mxu0 %v1207
    %1223 = vmatprep.subr.mxu0 0.0
    %1224 = vmatpush1.msra.mxu0 %v1208
    %1225 = vmatprep.subr.mxu0 0.0
    %1226 = vmatpush1.msra.mxu0 %v1209
    %1227 = vmatprep.subr.mxu0 0.0
    %1228 = vmatpush1.msra.mxu0 0.0
    %1229 = vmatprep.subr.mxu0 0.0
    %1230 = vmatpush1.msra.mxu0 0.0
    %1231 = vmatprep.subr.mxu0 0.0
    %1232 = vmatpush1.msra.mxu0 0.0
    %1233 = vmatprep.subr.mxu0 0.0
    %1234 = vmatpush1.msra.mxu0 0.0
    %1235 = vmatprep.subr.mxu0 0.0
    %1236 = vmatpush1.msra.mxu0 0.0
    %1237 = vmatprep.subr.mxu0 0.0
    %1238 = vmatpush1.msra.mxu0 0.0
    %1239 = vmatprep.subr.mxu0 0.0
    %1240 = vmatpush1.msra.mxu0 0.0
    %1241 = vmatprep.subr.mxu0 0.0
    %1242 = vmatpush1.msra.mxu0 0.0
    %1243 = vmatprep.subr.mxu0 0.0
    %1244 = vmatpush1.msra.mxu0 0.0
    %1245 = vmatprep.subr.mxu0 0.0
    %1246 = vmatpush1.msra.mxu0 0.0
    %1247 = vmatprep.subr.mxu0 0.0
    %1248 = vmatpush1.msra.mxu0 0.0
    %1249 = vmatprep.subr.mxu0 0.0
    %1250 = vmatpush1.msra.mxu0 0.0
    %1251 = vmatprep.subr.mxu0 0.0
    %1252 = vmatpush1.msra.mxu0 0.0
    %1253 = vmatprep.subr.mxu0 0.0
    %1254 = vmatpush1.msra.mxu0 0.0
    %1255 = vmatprep.subr.mxu0 0.0
    %1256 = vmatpush1.msra.mxu0 0.0
    %1257 = vmatprep.subr.mxu0 0.0
    %1258 = vmatpush1.msra.mxu0 0.0
    %1259 = vmatprep.subr.mxu0 0.0
    %1260 = vmatpush1.msra.mxu0 0.0
    %1261 = vmatprep.subr.mxu0 0.0
    %1262 = vmatpush1.msra.mxu0 0.0
    %1263 = vmatprep.subr.mxu0 0.0
    %1264 = vmatpush1.msra.mxu0 0.0
    %1265 = vmatprep.subr.mxu0 0.0
    %1266 = vmatpush1.msra.mxu0 0.0
    %1267 = vmatprep.subr.mxu0 0.0
    %1268 = vmatpush1.msra.mxu0 0.0
    %1269 = vmatprep.subr.mxu0 0.0
    %1270 = vmatpush1.msra.mxu0 0.0
    %1271 = vmatprep.subr.mxu0 0.0
    %1272 = vmatpush1.msra.mxu0 0.0
    %1273 = vmatprep.subr.mxu0 0.0
    %1274 = vmatpush1.msra.mxu0 0.0
    %1275 = vmatprep.subr.mxu0 0.0
    %1276 = vmatpush1.msra.mxu0 0.0
    %1277 = vmatprep.subr.mxu0 0.0
    %1278 = vmatpush1.msra.mxu0 0.0
    %1279 = vmatprep.subr.mxu0 0.0
    %1280 = vmatpush1.msra.mxu0 0.0
    %1281 = vmatprep.subr.mxu0 0.0
    %1282 = vmatpush1.msra.mxu0 0.0
    %1283 = vmatprep.mubr.f32.mxu0 0.0
    %1284 = vmatmul.mubr.f32.gmra.mrb[0].mxu0 %v1217
    %v1285 = vpop.f32.mrb[0].mxu0
    %v1286 = vadd.f32 %v1215, %v1285
    %v1287 = vpop.f32.mrb[0].mxu0
    %1288 = vdwg.mxu0
    %vm1289 = vcmask 58368
    %1290 = vst.msk [vmem:[#allocation5] sm:$0x3] %vm1289, %v1286
    // Predicated region
    $region30: #{rnn_classifier_forward.1} parent=1 // pred_check
      _
    $region31: #{rnn_classifier_forward.1} parent=1 // pred_check_branch
      %1292 = sbr.rel (0) target = $region33
    $region32: #{rnn_classifier_forward.1} parent=1 // pred_region
      %s1294 = ssub.s32 32, 32
      %1295 = vsyncadd [#allocation4], %s1294
      %s1297 = sshll.u32 [#allocation5], 4
      %s1298 = int_to_ptr.vmem [resolvable:$true] %s1297
      %1300 = dma.vmem_to_hbm [thread:$0]  %s1298, 32, %s6, [#allocation4]
    $region33: #{rnn_classifier_forward.1} parent=1 // pred_fallthru
      _
    // Predicated region
    $region34: #{rnn_classifier_forward.1} parent=1 // pred_check
      _
    $region35: #{rnn_classifier_forward.1} parent=1 // pred_check_branch
      %1302 = sbr.rel (0) target = $region37
    $region36: #{rnn_classifier_forward.1} parent=1 // pred_region
      _
    $region37: #{rnn_classifier_forward.1} parent=1 // pred_fallthru
      _
    // Predicated region
    $region38: #{rnn_classifier_forward.1} parent=1 // pred_check
      _
    $region39: #{rnn_classifier_forward.1} parent=1 // pred_check_branch
      %1304 = sbr.rel (0) target = $region41
    $region40: #{rnn_classifier_forward.1} parent=1 // pred_region
      %1305 = dma.done [#allocation4], 32
    $region41: #{rnn_classifier_forward.1} parent=1 // pred_fallthru
      _
    // Predicated region
    $region42: #{rnn_classifier_forward.1} parent=1 // pred_check
      _
    $region43: #{rnn_classifier_forward.1} parent=1 // pred_check_branch
      %1307 = sbr.rel (0) target = $region45
    $region44: #{rnn_classifier_forward.1} parent=1 // pred_region
      _
    $region45: #{rnn_classifier_forward.1} parent=1 // pred_fallthru
      _
    %1308 = vsyncpa [#allocation3], 1
    %1309 = vsyncpa [#allocation4], 1

</llo_original>
